<compile_context>
chip_gen: v5e
topology: v5e:2x2
jax: 0.10.0
libtpu: 0.0.40
codegen_flags: <defaults>
</compile_context>

<pallas_src>
import math

import jax
import jax.numpy as jnp
from jax import lax
from jax.experimental import pallas as pl
from jax.experimental.pallas import tpu as pltpu


FEAT_DIM = 2048          # resnet50 feature width
EMBED = 1023             # Conv1d(1,1,3,stride=2) output length: (2048-3)//2 + 1
EMBED_PAD = 1024         # lane-dense pad (multiple of 128); pad column is zero
HIDDEN = 32
N_LAYERS = 2
OUTPUT = 2
OUT_PAD = 128            # lane-dense FC output width (real cols sliced on host)

VMEM_LIMIT = 48 * 1024 * 1024          # > scoped defaults (16/32/32 MiB), < v7x 64 MiB
X_TILE_BUDGET = 16 * 1024 * 1024       # budget for the double-buffered x tile
MAX_TILE_N = 256                       # cap on frames per grid step


def _pick_tile_n(n, bytes_per_row, itemsize):
    """Largest frame tile whose double-buffered x tile fits the budget."""
    rows = max(8, X_TILE_BUDGET // (2 * max(bytes_per_row, 1)))
    rows = min(rows, MAX_TILE_N)
    if n <= rows:
        return n                                   # single/tail block == full dim
    step = 16 if itemsize < 4 else 8               # keep sub-32-bit sublane packing happy
    return max(step, (rows // step) * step)


# --------------------------------------------------------------------------
# Kernel 1: backbone stand-in + Conv1d + ReLU + fused layer-0 projection.
# --------------------------------------------------------------------------
def feat_conv(x2, w_taps, b_taps, wih0, b0, conv_wb):
    n, chw = x2.shape
    c = w_taps.shape[1]
    hw = chw // c
    g4 = wih0.shape[1]
    tile_n = _pick_tile_n(n, chw * x2.dtype.itemsize, x2.dtype.itemsize)

    def kernel(x_ref, wt_ref, bt_ref, wih_ref, b0_ref, cwb_ref, out_ref):
        xf = x_ref[...].astype(jnp.float32)                  # (tile, C*HW) bf16->f32
        tile = xf.shape[0]
        # Per-channel GAP columns, broadcast once and reused by all 3 taps
        # (hoisted: JAX does not CSE broadcast_in_dim).
        pb = []
        for ch in range(c):
            m = jnp.mean(xf[:, ch * hw:(ch + 1) * hw], axis=-1, keepdims=True)
            pb.append(jnp.broadcast_to(m, (tile, EMBED_PAD)))
        taps = []
        for k in range(3):                                   # the 3 conv taps
            w_k = wt_ref[k]                                  # (C, EMBED_PAD)
            acc = bt_ref[k:k + 1, :]                         # (1, EMBED_PAD)
            for ch in range(c):                              # K=3 -> VPU FMAs
                acc = acc + pb[ch] * w_k[ch:ch + 1, :]
            taps.append(jnp.maximum(acc, 0.0))               # backbone ReLU
        conv = (cwb_ref[0] * taps[0] + cwb_ref[1] * taps[1]
                + cwb_ref[2] * taps[2] + cwb_ref[3])
        conv = jnp.maximum(conv, 0.0)                        # Conv1d + ReLU
        # Fused LSTM layer-0 input-to-hidden projection; wih0 pad rows are
        # zero so the (unmasked) pad lane of `conv` contributes nothing.
        out_ref[...] = (jnp.dot(conv, wih_ref[...],
                                preferred_element_type=jnp.float32)
                        + b0_ref[...])

    return pl.pallas_call(
        kernel,
        out_shape=jax.ShapeDtypeStruct((n, g4), jnp.float32),
        grid=(pl.cdiv(n, tile_n),),
        in_specs=[
            pl.BlockSpec((tile_n, chw), lambda i: (i, 0)),
            pl.BlockSpec((3, c, EMBED_PAD), lambda i: (0, 0, 0)),
            pl.BlockSpec((3, EMBED_PAD), lambda i: (0, 0)),
            pl.BlockSpec((EMBED_PAD, g4), lambda i: (0, 0)),
            pl.BlockSpec((1, g4), lambda i: (0, 0)),
            pl.BlockSpec((4,), lambda i: (0,),
                         memory_space=pltpu.MemorySpace.SMEM),
        ],
        out_specs=pl.BlockSpec((tile_n, g4), lambda i: (i, 0)),
        compiler_params=pltpu.CompilerParams(
            dimension_semantics=("parallel",),
            vmem_limit_bytes=VMEM_LIMIT),
    )(x2, w_taps, b_taps, wih0, b0, conv_wb)


# --------------------------------------------------------------------------
# Kernel 2: fused 2-layer LSTM + final Linear, gridded over batch chunks.
# Rows inside a chunk are time-major (row = t*CB + b_local), so the recurrent
# loop does one contiguous block load/store per timestep.
# --------------------------------------------------------------------------
def _const_block(a):
    if a.ndim == 1:
        return pl.BlockSpec(a.shape, lambda cb: (0,))
    if a.ndim == 2:
        return pl.BlockSpec(a.shape, lambda cb: (0, 0))
    return pl.BlockSpec(a.shape, lambda cb: (0, 0, 0))


def seq_head(gx0, t_len, n_b, whh0, rest_layers, fc_w, fc_b):
    rows = t_len * n_b
    nc = gx0.shape[0] // rows
    hd = whh0.shape[0]
    g4 = whh0.shape[1]
    p = fc_w.shape[1]
    n_rest = len(rest_layers)
    rest_flat = [a for layer in rest_layers for a in layer]

    def kernel(*refs):
        gx0_ref, whh0_ref = refs[0], refs[1]
        rest_refs = refs[2:2 + 3 * n_rest]
        fcw_ref = refs[2 + 3 * n_rest]
        fcb_ref = refs[3 + 3 * n_rest]
        out_ref = refs[4 + 3 * n_rest]
        gx_scr, h_scr = refs[5 + 3 * n_rest], refs[6 + 3 * n_rest]

        lane = lax.broadcasted_iota(jnp.int32, (n_b, g4), 1)
        g_mask = (lane >= 2 * hd) & (lane < 3 * hd)          # g-gate lanes (i|f|g|o)
        zeros = jnp.zeros((n_b, hd), jnp.float32)
        unroll = True if t_len <= 8 else 4                   # partial unroll for long T

        def row_start(t):
            s = t * n_b
            return pl.multiple_of(s, 8) if n_b % 8 == 0 else s

        def run_layer(xg_ref, whh):
            # Serial recurrence: one contiguous (CB,4H) load, tiny MXU matmul,
            # one tanh over the full gate vreg, one contiguous (CB,H) store.
            def step(t, carry):
                h, c = carry
                s = row_start(t)
                gates = xg_ref[pl.ds(s, n_b), :] + jnp.dot(
                    h, whh, preferred_element_type=jnp.float32)
                # i/f/o columns were pre-scaled by 0.5 in the params, so
                # sigmoid(x) == 0.5 + 0.5 * tanh(scaled) -> single tanh/EUP push.
                th = jnp.tanh(gates)
                act = jnp.where(g_mask, th, 0.5 + 0.5 * th)
                i_g = act[:, 0:hd]
                f_g = act[:, hd:2 * hd]
                g_g = act[:, 2 * hd:3 * hd]
                o_g = act[:, 3 * hd:4 * hd]
                c_new = f_g * c + i_g * g_g
                h_new = o_g * jnp.tanh(c_new)
                h_scr[pl.ds(s, n_b), :] = h_new
                return h_new, c_new
            lax.fori_loop(0, t_len, step, (zeros, zeros), unroll=unroll)

        # Layer 0: input-to-hidden gates were fused into kernel 1.
        run_layer(gx0_ref, whh0_ref[...])

        # Layers >= 1: hoisted input-to-hidden matmul (one MXU call), then
        # recurrence (h scratch is fully consumed by the matmul before reuse).
        for l in range(n_rest):
            wih_ref, whh_ref, b_ref = rest_refs[3 * l:3 * l + 3]
            gx_scr[...] = (jnp.dot(h_scr[...], wih_ref[...],
                                   preferred_element_type=jnp.float32)
                           + b_ref[...])
            run_layer(gx_scr, whh_ref[...])

        # Hoisted final Linear over all chunk rows, lane-dense (rows, 128) store.
        out_ref[...] = (jnp.dot(h_scr[...], fcw_ref[...],
                                preferred_element_type=jnp.float32)
                        + fcb_ref[...])

    in_specs = [pl.BlockSpec((rows, g4), lambda cb: (cb, 0)),
                _const_block(whh0)]
    in_specs += [_const_block(a) for a in rest_flat]
    in_specs += [_const_block(fc_w), _const_block(fc_b)]

    return pl.pallas_call(
        kernel,
        out_shape=jax.ShapeDtypeStruct((nc * rows, p), jnp.float32),
        grid=(nc,),
        in_specs=in_specs,
        out_specs=pl.BlockSpec((rows, p), lambda cb: (cb, 0)),
        scratch_shapes=[pltpu.VMEM((rows, g4), jnp.float32),   # hoisted gates_x
                        pltpu.VMEM((rows, hd), jnp.float32)],  # layer h outputs
        compiler_params=pltpu.CompilerParams(
            dimension_semantics=("parallel",),     # batch chunks -> 2nd TC on v7x
            vmem_limit_bytes=VMEM_LIMIT),
    )(gx0, whh0, *rest_flat, fc_w, fc_b)


# --------------------------- model parameters ------------------------------
def init_params(key):
    ks = jax.random.split(key, 5 + 3 * N_LAYERS)
    p = {}
    # ResNet50 stand-in: GAP + (C -> 2048) projection + ReLU.
    p["feat_w"] = 0.05 * jax.random.normal(ks[0], (3, FEAT_DIM), jnp.float32)
    p["feat_b"] = 0.05 * jax.random.normal(ks[1], (1, FEAT_DIM), jnp.float32)
    # Conv1d(1, 1, 3, stride=2): [w0, w1, w2, bias]
    p["conv_wb"] = 0.5 * jax.random.normal(ks[2], (4,), jnp.float32)

    # LSTM layers (gate order i|f|g|o along columns, weights stored transposed).
    s = 1.0 / math.sqrt(HIDDEN)
    lstm = []
    for l in range(N_LAYERS):
        din = EMBED_PAD if l == 0 else HIDDEN
        wih = jax.random.uniform(ks[3 + 3 * l], (din, 4 * HIDDEN), jnp.float32,
                                 minval=-s, maxval=s)
        if l == 0:
            # Pad input lane must contribute 0 (this is the single defence now
            # that kernel 1 no longer masks the pad lane).
            wih = wih.at[EMBED:, :].set(0.0)
        whh = jax.random.uniform(ks[4 + 3 * l], (HIDDEN, 4 * HIDDEN),
                                 jnp.float32, minval=-s, maxval=s)
        bias = jax.random.uniform(ks[5 + 3 * l], (1, 4 * HIDDEN), jnp.float32,
                                  minval=-s, maxval=s)
        lstm.append((wih, whh, bias))
    p["lstm"] = lstm
    p["fc_w"] = jax.random.uniform(ks[-2], (HIDDEN, OUTPUT), jnp.float32,
                                   minval=-s, maxval=s)
    p["fc_b"] = jax.random.uniform(ks[-1], (1, OUTPUT), jnp.float32,
                                   minval=-s, maxval=s)
    return p


def _tap_split(a):
    # Split 2048 projection columns into the three Conv1d stride-2 tap sets.
    t0 = a[:, 0:2 * EMBED:2]
    t1 = a[:, 1:2 * EMBED:2]
    t2 = a[:, 2:2 * EMBED + 2:2]
    pad = ((0, 0), (0, EMBED_PAD - EMBED))
    return jnp.stack([jnp.pad(t0, pad), jnp.pad(t1, pad), jnp.pad(t2, pad)],
                     axis=0)


def _gate_scale():
    # 0.5 on i/f/o gate columns, 1.0 on g columns (enables the single-tanh trick).
    col = jnp.arange(4 * HIDDEN)
    is_g = (col >= 2 * HIDDEN) & (col < 3 * HIDDEN)
    return jnp.where(is_g, 1.0, 0.5)[None, :].astype(jnp.float32)


def prep_kernel_params(p):
    kp = {}
    kp["w_taps"] = _tap_split(p["feat_w"])                  # (3, 3, 1024)
    kp["b_taps"] = _tap_split(p["feat_b"])[:, 0, :]         # (3, 1024)
    kp["conv_wb"] = p["conv_wb"]
    sc = _gate_scale()
    wih0, whh0, b0 = p["lstm"][0]
    kp["wih0"] = wih0 * sc                                  # pad rows stay zero
    kp["whh0"] = whh0 * sc
    kp["b0"] = b0 * sc
    kp["lstm_rest"] = [(wih * sc, whh * sc, b * sc)
                       for (wih, whh, b) in p["lstm"][1:]]
    kp["fc_w"] = jnp.pad(p["fc_w"], ((0, 0), (0, OUT_PAD - OUTPUT)))
    kp["fc_b"] = jnp.pad(p["fc_b"], ((0, 0), (0, OUT_PAD - OUTPUT)))
    return kp


# ------------------------------ forward ------------------------------------
def iter_star_rgb_forward(x, kp):
    B, T, C, H, W = x.shape
    N = B * T
    g4 = 4 * HIDDEN
    # x.view(-1, C, H, W); bf16 transfer halves the HBM-bound read in kernel 1.
    x2 = x.reshape(N, C * H * W).astype(jnp.bfloat16)
    gx0 = feat_conv(x2, kp["w_taps"], kp["b_taps"],
                    kp["wih0"], kp["b0"], kp["conv_wb"])       # (N, 128)

    # Tiny host-side layout plumbing on the (N,128) intermediate: regroup into
    # time-major order per batch chunk so kernel 2 does contiguous block
    # accesses every timestep.
    cb = B if B <= 8 else 8
    nc = -(-B // cb)
    g = gx0.reshape(B, T, g4)
    if nc * cb != B:
        g = jnp.pad(g, ((0, nc * cb - B), (0, 0), (0, 0)))
    g = g.reshape(nc, cb, T, g4).transpose(0, 2, 1, 3).reshape(nc * T * cb, g4)

    out = seq_head(g, T, cb, kp["whh0"], kp["lstm_rest"],
                   kp["fc_w"], kp["fc_b"])                     # (nc*T*cb, 128)

    # Back to PyTorch's flat n = b*T + t ordering, slice the real FC columns.
    out = (out.reshape(nc, T, cb, OUT_PAD).transpose(0, 2, 1, 3)
              .reshape(nc * cb, T, OUT_PAD)[:B]
              .reshape(N, OUT_PAD)[:, :OUTPUT])
    return out


# ------------------------- pure-JAX reference -------------------------------
def reference_forward(x, params):
    B, T, C, H, W = x.shape
    N = B * T
    xf = x.reshape(N, C, H * W).astype(jnp.bfloat16).astype(jnp.float32)
    pooled = xf.mean(-1)
    feat = jnp.maximum(pooled @ params["feat_w"] + params["feat_b"], 0.0)
    w0, w1, w2, cbias = params["conv_wb"]
    conv = jnp.maximum(w0 * feat[:, 0:2046:2] + w1 * feat[:, 1:2046:2]
                       + w2 * feat[:, 2:2048:2] + cbias, 0.0)
    seq = jnp.pad(conv, ((0, 0), (0, EMBED_PAD - EMBED))).reshape(B, T, EMBED_PAD)
    for (wih, whh, bias) in params["lstm"]:
        hd = whh.shape[0]
        h = jnp.zeros((B, hd), jnp.float32)
        cst = jnp.zeros((B, hd), jnp.float32)
        outs = []
        for t in range(T):
            gts = seq[:, t, :] @ wih + h @ whh + bias
            i = jax.nn.sigmoid(gts[:, :hd])
            f = jax.nn.sigmoid(gts[:, hd:2 * hd])
            gg = jnp.tanh(gts[:, 2 * hd:3 * hd])
            o = jax.nn.sigmoid(gts[:, 3 * hd:])
            cst = f * cst + i * gg
            h = o * jnp.tanh(cst)
            outs.append(h)
        seq = jnp.stack(outs, axis=1)
    return seq.reshape(N, -1) @ params["fc_w"] + params["fc_b"]


# --------------------------------- main -------------------------------------
if __name__ == "__main__":
    key = jax.random.PRNGKey(0)
    k_param, k_x = jax.random.split(key)
    params = init_params(k_param)
    kparams = prep_kernel_params(params)

    # Small shapes consistent with the module: B=2, T=4, C=3 (RGB), H=W=16.
    x = jax.random.normal(k_x, (2, 4, 3, 16, 16), jnp.float32)

    fwd = jax.jit(iter_star_rgb_forward)
    out = jax.block_until_ready(fwd(x, kparams))
    ref = jax.block_until_ready(reference_forward(x, params))

    assert out.shape == (2 * 4, OUTPUT), out.shape
    assert jnp.allclose(out, ref, rtol=2e-3, atol=2e-3), (
        "max abs diff = %e" % float(jnp.max(jnp.abs(out - ref))))

    print("KERNEL_OK")
</pallas_src>

<mosaic_0001>
module attributes {stable_mosaic.version = 11 : i64} {
  func.func @kernel(%arg0: i32, %arg1: memref<8x768xbf16, #tpu.memory_space<vmem>>, %arg2: memref<3x3x1024xf32, #tpu.memory_space<vmem>>, %arg3: memref<3x1024xf32, #tpu.memory_space<vmem>>, %arg4: memref<1024x128xf32, #tpu.memory_space<vmem>>, %arg5: memref<1x128xf32, #tpu.memory_space<vmem>>, %arg6: memref<4xf32, #tpu.memory_space<smem>>, %arg7: memref<8x128xf32, #tpu.memory_space<vmem>>) attributes {dimension_semantics = [#tpu.dimension_semantics<parallel>], iteration_bounds = array<i64: 1>, scalar_prefetch = 0 : i64, scratch_operands = 0 : i64, tpu.core_type = #tpu.core_type<tc>, window_params = [{transform_indices = @transform_0, window_bounds = array<i64: 8, 768>}, {pipeline_mode = #tpu.pipeline_mode<synchronous>, transform_indices = @transform_1, window_bounds = array<i64: 3, 3, 1024>}, {pipeline_mode = #tpu.pipeline_mode<synchronous>, transform_indices = @transform_2, window_bounds = array<i64: 3, 1024>}, {pipeline_mode = #tpu.pipeline_mode<synchronous>, transform_indices = @transform_3, window_bounds = array<i64: 1024, 128>}, {pipeline_mode = #tpu.pipeline_mode<synchronous>, transform_indices = @transform_4, window_bounds = array<i64: 1, 128>}, {transform_indices = @transform_5, window_bounds = array<i64: 4>}, {transform_indices = @transform_6, window_bounds = array<i64: 8, 128>}]} {
    %c0 = arith.constant 0 : index
    %c0_0 = arith.constant 0 : index
    %0 = vector.load %arg1[%c0, %c0_0] : memref<8x768xbf16, #tpu.memory_space<vmem>>, vector<8x768xbf16>
    %1 = arith.extf %0 : vector<8x768xbf16> to vector<8x768xf32>
    %2 = vector.extract_strided_slice %1 {offsets = [0, 0], sizes = [8, 256], strides = [1, 1]} : vector<8x768xf32> to vector<8x256xf32>
    %cst = arith.constant dense<0.000000e+00> : vector<8xf32>
    %3 = vector.multi_reduction <add>, %2, %cst [1] : vector<8x256xf32> to vector<8xf32>
    %4 = vector.shape_cast %3 : vector<8xf32> to vector<8x1xf32>
    %cst_1 = arith.constant 2.560000e+02 : f32
    %5 = vector.broadcast %cst_1 : f32 to vector<8x1xf32>
    %6 = arith.divf %4, %5 : vector<8x1xf32>
    %7 = vector.shape_cast %6 : vector<8x1xf32> to vector<8x1xf32>
    %8 = vector.broadcast %7 : vector<8x1xf32> to vector<8x1024xf32>
    %9 = vector.extract_strided_slice %1 {offsets = [0, 256], sizes = [8, 256], strides = [1, 1]} : vector<8x768xf32> to vector<8x256xf32>
    %cst_2 = arith.constant dense<0.000000e+00> : vector<8xf32>
    %10 = vector.multi_reduction <add>, %9, %cst_2 [1] : vector<8x256xf32> to vector<8xf32>
    %11 = vector.shape_cast %10 : vector<8xf32> to vector<8x1xf32>
    %cst_3 = arith.constant 2.560000e+02 : f32
    %12 = vector.broadcast %cst_3 : f32 to vector<8x1xf32>
    %13 = arith.divf %11, %12 : vector<8x1xf32>
    %14 = vector.shape_cast %13 : vector<8x1xf32> to vector<8x1xf32>
    %15 = vector.broadcast %14 : vector<8x1xf32> to vector<8x1024xf32>
    %16 = vector.extract_strided_slice %1 {offsets = [0, 512], sizes = [8, 256], strides = [1, 1]} : vector<8x768xf32> to vector<8x256xf32>
    %cst_4 = arith.constant dense<0.000000e+00> : vector<8xf32>
    %17 = vector.multi_reduction <add>, %16, %cst_4 [1] : vector<8x256xf32> to vector<8xf32>
    %18 = vector.shape_cast %17 : vector<8xf32> to vector<8x1xf32>
    %cst_5 = arith.constant 2.560000e+02 : f32
    %19 = vector.broadcast %cst_5 : f32 to vector<8x1xf32>
    %20 = arith.divf %18, %19 : vector<8x1xf32>
    %21 = vector.shape_cast %20 : vector<8x1xf32> to vector<8x1xf32>
    %22 = vector.broadcast %21 : vector<8x1xf32> to vector<8x1024xf32>
    %c0_6 = arith.constant 0 : index
    %c0_7 = arith.constant 0 : index
    %c0_8 = arith.constant 0 : index
    %23 = vector.load %arg2[%c0_6, %c0_7, %c0_8] : memref<3x3x1024xf32, #tpu.memory_space<vmem>>, vector<1x3x1024xf32>
    %24 = vector.shape_cast %23 : vector<1x3x1024xf32> to vector<3x1024xf32>
    %c0_9 = arith.constant 0 : index
    %c0_10 = arith.constant 0 : index
    %25 = vector.load %arg3[%c0_9, %c0_10] : memref<3x1024xf32, #tpu.memory_space<vmem>>, vector<1x1024xf32>
    %26 = vector.extract_strided_slice %24 {offsets = [0, 0], sizes = [1, 1024], strides = [1, 1]} : vector<3x1024xf32> to vector<1x1024xf32>
    %27 = vector.broadcast %26 : vector<1x1024xf32> to vector<8x1024xf32>
    %28 = arith.mulf %8, %27 : vector<8x1024xf32>
    %29 = vector.broadcast %25 : vector<1x1024xf32> to vector<8x1024xf32>
    %30 = arith.addf %29, %28 : vector<8x1024xf32>
    %31 = vector.extract_strided_slice %24 {offsets = [1, 0], sizes = [1, 1024], strides = [1, 1]} : vector<3x1024xf32> to vector<1x1024xf32>
    %32 = vector.broadcast %31 : vector<1x1024xf32> to vector<8x1024xf32>
    %33 = arith.mulf %15, %32 : vector<8x1024xf32>
    %34 = arith.addf %30, %33 : vector<8x1024xf32>
    %35 = vector.extract_strided_slice %24 {offsets = [2, 0], sizes = [1, 1024], strides = [1, 1]} : vector<3x1024xf32> to vector<1x1024xf32>
    %36 = vector.broadcast %35 : vector<1x1024xf32> to vector<8x1024xf32>
    %37 = arith.mulf %22, %36 : vector<8x1024xf32>
    %38 = arith.addf %34, %37 : vector<8x1024xf32>
    %cst_11 = arith.constant 0.000000e+00 : f32
    %39 = vector.broadcast %cst_11 : f32 to vector<8x1024xf32>
    %40 = arith.maximumf %38, %39 : vector<8x1024xf32>
    %c1 = arith.constant 1 : index
    %c0_12 = arith.constant 0 : index
    %c0_13 = arith.constant 0 : index
    %41 = vector.load %arg2[%c1, %c0_12, %c0_13] : memref<3x3x1024xf32, #tpu.memory_space<vmem>>, vector<1x3x1024xf32>
    %42 = vector.shape_cast %41 : vector<1x3x1024xf32> to vector<3x1024xf32>
    %c1_14 = arith.constant 1 : index
    %c0_15 = arith.constant 0 : index
    %43 = vector.load %arg3[%c1_14, %c0_15] : memref<3x1024xf32, #tpu.memory_space<vmem>>, vector<1x1024xf32>
    %44 = vector.extract_strided_slice %42 {offsets = [0, 0], sizes = [1, 1024], strides = [1, 1]} : vector<3x1024xf32> to vector<1x1024xf32>
    %45 = vector.broadcast %44 : vector<1x1024xf32> to vector<8x1024xf32>
    %46 = arith.mulf %8, %45 : vector<8x1024xf32>
    %47 = vector.broadcast %43 : vector<1x1024xf32> to vector<8x1024xf32>
    %48 = arith.addf %47, %46 : vector<8x1024xf32>
    %49 = vector.extract_strided_slice %42 {offsets = [1, 0], sizes = [1, 1024], strides = [1, 1]} : vector<3x1024xf32> to vector<1x1024xf32>
    %50 = vector.broadcast %49 : vector<1x1024xf32> to vector<8x1024xf32>
    %51 = arith.mulf %15, %50 : vector<8x1024xf32>
    %52 = arith.addf %48, %51 : vector<8x1024xf32>
    %53 = vector.extract_strided_slice %42 {offsets = [2, 0], sizes = [1, 1024], strides = [1, 1]} : vector<3x1024xf32> to vector<1x1024xf32>
    %54 = vector.broadcast %53 : vector<1x1024xf32> to vector<8x1024xf32>
    %55 = arith.mulf %22, %54 : vector<8x1024xf32>
    %56 = arith.addf %52, %55 : vector<8x1024xf32>
    %cst_16 = arith.constant 0.000000e+00 : f32
    %57 = vector.broadcast %cst_16 : f32 to vector<8x1024xf32>
    %58 = arith.maximumf %56, %57 : vector<8x1024xf32>
    %c2 = arith.constant 2 : index
    %c0_17 = arith.constant 0 : index
    %c0_18 = arith.constant 0 : index
    %59 = vector.load %arg2[%c2, %c0_17, %c0_18] : memref<3x3x1024xf32, #tpu.memory_space<vmem>>, vector<1x3x1024xf32>
    %60 = vector.shape_cast %59 : vector<1x3x1024xf32> to vector<3x1024xf32>
    %c2_19 = arith.constant 2 : index
    %c0_20 = arith.constant 0 : index
    %61 = vector.load %arg3[%c2_19, %c0_20] : memref<3x1024xf32, #tpu.memory_space<vmem>>, vector<1x1024xf32>
    %62 = vector.extract_strided_slice %60 {offsets = [0, 0], sizes = [1, 1024], strides = [1, 1]} : vector<3x1024xf32> to vector<1x1024xf32>
    %63 = vector.broadcast %62 : vector<1x1024xf32> to vector<8x1024xf32>
    %64 = arith.mulf %8, %63 : vector<8x1024xf32>
    %65 = vector.broadcast %61 : vector<1x1024xf32> to vector<8x1024xf32>
    %66 = arith.addf %65, %64 : vector<8x1024xf32>
    %67 = vector.extract_strided_slice %60 {offsets = [1, 0], sizes = [1, 1024], strides = [1, 1]} : vector<3x1024xf32> to vector<1x1024xf32>
    %68 = vector.broadcast %67 : vector<1x1024xf32> to vector<8x1024xf32>
    %69 = arith.mulf %15, %68 : vector<8x1024xf32>
    %70 = arith.addf %66, %69 : vector<8x1024xf32>
    %71 = vector.extract_strided_slice %60 {offsets = [2, 0], sizes = [1, 1024], strides = [1, 1]} : vector<3x1024xf32> to vector<1x1024xf32>
    %72 = vector.broadcast %71 : vector<1x1024xf32> to vector<8x1024xf32>
    %73 = arith.mulf %22, %72 : vector<8x1024xf32>
    %74 = arith.addf %70, %73 : vector<8x1024xf32>
    %cst_21 = arith.constant 0.000000e+00 : f32
    %75 = vector.broadcast %cst_21 : f32 to vector<8x1024xf32>
    %76 = arith.maximumf %74, %75 : vector<8x1024xf32>
    %c0_22 = arith.constant 0 : index
    %77 = memref.load %arg6[%c0_22] : memref<4xf32, #tpu.memory_space<smem>>
    %78 = vector.broadcast %77 : f32 to vector<8x1024xf32>
    %79 = arith.mulf %78, %40 : vector<8x1024xf32>
    %c1_23 = arith.constant 1 : index
    %80 = memref.load %arg6[%c1_23] : memref<4xf32, #tpu.memory_space<smem>>
    %81 = vector.broadcast %80 : f32 to vector<8x1024xf32>
    %82 = arith.mulf %81, %58 : vector<8x1024xf32>
    %83 = arith.addf %79, %82 : vector<8x1024xf32>
    %c2_24 = arith.constant 2 : index
    %84 = memref.load %arg6[%c2_24] : memref<4xf32, #tpu.memory_space<smem>>
    %85 = vector.broadcast %84 : f32 to vector<8x1024xf32>
    %86 = arith.mulf %85, %76 : vector<8x1024xf32>
    %87 = arith.addf %83, %86 : vector<8x1024xf32>
    %c3 = arith.constant 3 : index
    %88 = memref.load %arg6[%c3] : memref<4xf32, #tpu.memory_space<smem>>
    %89 = vector.broadcast %88 : f32 to vector<8x1024xf32>
    %90 = arith.addf %87, %89 : vector<8x1024xf32>
    %cst_25 = arith.constant 0.000000e+00 : f32
    %91 = vector.broadcast %cst_25 : f32 to vector<8x1024xf32>
    %92 = arith.maximumf %90, %91 : vector<8x1024xf32>
    %c0_26 = arith.constant 0 : index
    %c0_27 = arith.constant 0 : index
    %93 = vector.load %arg4[%c0_26, %c0_27] : memref<1024x128xf32, #tpu.memory_space<vmem>>, vector<1024x128xf32>
    %cst_28 = arith.constant dense<0.000000e+00> : vector<8x128xf32>
    %94 = tpu.matmul %92, %93, %cst_28 {dimension_numbers = #tpu.dot_dimension_numbers<[1], [0], [0], [1], [0, 0, 1, 1], [], []>} : vector<8x1024xf32>, vector<1024x128xf32>, vector<8x128xf32> -> vector<8x128xf32>
    %c0_29 = arith.constant 0 : index
    %c0_30 = arith.constant 0 : index
    %95 = vector.load %arg5[%c0_29, %c0_30] : memref<1x128xf32, #tpu.memory_space<vmem>>, vector<1x128xf32>
    %96 = vector.broadcast %95 : vector<1x128xf32> to vector<8x128xf32>
    %97 = arith.addf %94, %96 : vector<8x128xf32>
    %c0_31 = arith.constant 0 : index
    %c0_32 = arith.constant 0 : index
    %98 = vector.load %arg7[%c0_31, %c0_32] : memref<8x128xf32, #tpu.memory_space<vmem>>, vector<8x128xf32>
    tpu.vector_store %arg7[%c0_31, %c0_32], %97 {strides = array<i32>} : memref<8x128xf32, #tpu.memory_space<vmem>>, vector<8x128xf32>,
    return
  }
  func.func @transform_0(%arg0: i32) -> (i32, i32) {
    %c0_i32 = arith.constant 0 : i32
    %c0_i32_0 = arith.constant 0 : i32
    return %arg0, %c0_i32 : i32, i32
  }
  func.func @transform_1(%arg0: i32) -> (i32, i32, i32) {
    %c0_i32 = arith.constant 0 : i32
    %c0_i32_0 = arith.constant 0 : i32
    %c0_i32_1 = arith.constant 0 : i32
    %c0_i32_2 = arith.constant 0 : i32
    return %c0_i32, %c0_i32_0, %c0_i32_1 : i32, i32, i32
  }
  func.func @transform_2(%arg0: i32) -> (i32, i32) {
    %c0_i32 = arith.constant 0 : i32
    %c0_i32_0 = arith.constant 0 : i32
    %c0_i32_1 = arith.constant 0 : i32
    return %c0_i32, %c0_i32_0 : i32, i32
  }
  func.func @transform_3(%arg0: i32) -> (i32, i32) {
    %c0_i32 = arith.constant 0 : i32
    %c0_i32_0 = arith.constant 0 : i32
    %c0_i32_1 = arith.constant 0 : i32
    return %c0_i32, %c0_i32_0 : i32, i32
  }
  func.func @transform_4(%arg0: i32) -> (i32, i32) {
    %c0_i32 = arith.constant 0 : i32
    %c0_i32_0 = arith.constant 0 : i32
    %c0_i32_1 = arith.constant 0 : i32
    return %c0_i32, %c0_i32_0 : i32, i32
  }
  func.func @transform_5(%arg0: i32) -> i32 {
    %c0_i32 = arith.constant 0 : i32
    %c0_i32_0 = arith.constant 0 : i32
    return %c0_i32 : i32
  }
  func.func @transform_6(%arg0: i32) -> (i32, i32) {
    %c0_i32 = arith.constant 0 : i32
    %c0_i32_0 = arith.constant 0 : i32
    return %arg0, %c0_i32 : i32, i32
  }
}

module attributes {stable_mosaic.version = 11 : i64} {
  func.func @kernel(%arg0: i32, %arg1: memref<8x128xf32, #tpu.memory_space<vmem>>, %arg2: memref<32x128xf32, #tpu.memory_space<vmem>>, %arg3: memref<32x128xf32, #tpu.memory_space<vmem>>, %arg4: memref<32x128xf32, #tpu.memory_space<vmem>>, %arg5: memref<1x128xf32, #tpu.memory_space<vmem>>, %arg6: memref<32x128xf32, #tpu.memory_space<vmem>>, %arg7: memref<1x128xf32, #tpu.memory_space<vmem>>, %arg8: memref<8x128xf32, #tpu.memory_space<vmem>>, %arg9: memref<8x128xf32, #tpu.memory_space<vmem>>, %arg10: memref<8x32xf32, #tpu.memory_space<vmem>>) attributes {dimension_semantics = [#tpu.dimension_semantics<parallel>], iteration_bounds = array<i64: 1>, scalar_prefetch = 0 : i64, scratch_operands = 2 : i64, tpu.core_type = #tpu.core_type<tc>, window_params = [{transform_indices = @transform_0, window_bounds = array<i64: 8, 128>}, {pipeline_mode = #tpu.pipeline_mode<synchronous>, transform_indices = @transform_1, window_bounds = array<i64: 32, 128>}, {pipeline_mode = #tpu.pipeline_mode<synchronous>, transform_indices = @transform_2, window_bounds = array<i64: 32, 128>}, {pipeline_mode = #tpu.pipeline_mode<synchronous>, transform_indices = @transform_3, window_bounds = array<i64: 32, 128>}, {pipeline_mode = #tpu.pipeline_mode<synchronous>, transform_indices = @transform_4, window_bounds = array<i64: 1, 128>}, {pipeline_mode = #tpu.pipeline_mode<synchronous>, transform_indices = @transform_5, window_bounds = array<i64: 32, 128>}, {pipeline_mode = #tpu.pipeline_mode<synchronous>, transform_indices = @transform_6, window_bounds = array<i64: 1, 128>}, {transform_indices = @transform_7, window_bounds = array<i64: 8, 128>}]} {
    %0 = tpu.iota {dimensions = array<i32: 1>} : vector<2x128xi32>
    %c64_i32 = arith.constant 64 : i32
    %1 = vector.broadcast %c64_i32 : i32 to vector<2x128xi32>
    %2 = arith.cmpi sge, %0, %1 : vector<2x128xi32>
    %c96_i32 = arith.constant 96 : i32
    %3 = vector.broadcast %c96_i32 : i32 to vector<2x128xi32>
    %4 = arith.cmpi slt, %0, %3 : vector<2x128xi32>
    %5 = arith.andi %2, %4 : vector<2x128xi1>
    %cst = arith.constant 0.000000e+00 : f32
    %6 = vector.broadcast %cst : f32 to vector<2x32xf32>
    %c0 = arith.constant 0 : index
    %c0_0 = arith.constant 0 : index
    %7 = vector.load %arg2[%c0, %c0_0] : memref<32x128xf32, #tpu.memory_space<vmem>>, vector<32x128xf32>
    %c0_i32 = arith.constant 0 : i32
    %c2_i32 = arith.constant 2 : i32
    %8 = arith.muli %c0_i32, %c2_i32 : i32
    %9 = arith.index_cast %8 : i32 to index
    %c0_1 = arith.constant 0 : index
    %10 = vector.load %arg1[%9, %c0_1] : memref<8x128xf32, #tpu.memory_space<vmem>>, vector<2x128xf32>
    %cst_2 = arith.constant dense<0.000000e+00> : vector<2x128xf32>
    %11 = tpu.matmul %6, %7, %cst_2 {dimension_numbers = #tpu.dot_dimension_numbers<[1], [0], [0], [1], [0, 0, 1, 1], [], []>} : vector<2x32xf32>, vector<32x128xf32>, vector<2x128xf32> -> vector<2x128xf32>
    %12 = arith.addf %10, %11 : vector<2x128xf32>
    %13 = math.tanh %12 : vector<2x128xf32>
    %cst_3 = arith.constant 5.000000e-01 : f32
    %14 = vector.broadcast %cst_3 : f32 to vector<2x128xf32>
    %15 = arith.mulf %14, %13 : vector<2x128xf32>
    %cst_4 = arith.constant 5.000000e-01 : f32
    %16 = vector.broadcast %cst_4 : f32 to vector<2x128xf32>
    %17 = arith.addf %16, %15 : vector<2x128xf32>
    %18 = arith.select %5, %13, %17 : vector<2x128xi1>, vector<2x128xf32>
    %19 = vector.extract_strided_slice %18 {offsets = [0, 0], sizes = [2, 32], strides = [1, 1]} : vector<2x128xf32> to vector<2x32xf32>
    %20 = vector.extract_strided_slice %18 {offsets = [0, 32], sizes = [2, 32], strides = [1, 1]} : vector<2x128xf32> to vector<2x32xf32>
    %21 = vector.extract_strided_slice %18 {offsets = [0, 64], sizes = [2, 32], strides = [1, 1]} : vector<2x128xf32> to vector<2x32xf32>
    %22 = vector.extract_strided_slice %18 {offsets = [0, 96], sizes = [2, 32], strides = [1, 1]} : vector<2x128xf32> to vector<2x32xf32>
    %23 = arith.mulf %20, %6 : vector<2x32xf32>
    %24 = arith.mulf %19, %21 : vector<2x32xf32>
    %25 = arith.addf %23, %24 : vector<2x32xf32>
    %26 = math.tanh %25 : vector<2x32xf32>
    %27 = arith.mulf %22, %26 : vector<2x32xf32>
    %28 = arith.index_cast %8 : i32 to index
    %c0_5 = arith.constant 0 : index
    %29 = vector.load %arg10[%28, %c0_5] : memref<8x32xf32, #tpu.memory_space<vmem>>, vector<2x32xf32>
    tpu.vector_store %arg10[%28, %c0_5], %27 {strides = array<i32>} : memref<8x32xf32, #tpu.memory_space<vmem>>, vector<2x32xf32>,
    %c1_i32 = arith.constant 1 : i32
    %c2_i32_6 = arith.constant 2 : i32
    %30 = arith.muli %c1_i32, %c2_i32_6 : i32
    %31 = arith.index_cast %30 : i32 to index
    %c0_7 = arith.constant 0 : index
    %32 = vector.load %arg1[%31, %c0_7] : memref<8x128xf32, #tpu.memory_space<vmem>>, vector<2x128xf32>
    %cst_8 = arith.constant dense<0.000000e+00> : vector<2x128xf32>
    %33 = tpu.matmul %27, %7, %cst_8 {dimension_numbers = #tpu.dot_dimension_numbers<[1], [0], [0], [1], [0, 0, 1, 1], [], []>} : vector<2x32xf32>, vector<32x128xf32>, vector<2x128xf32> -> vector<2x128xf32>
    %34 = arith.addf %32, %33 : vector<2x128xf32>
    %35 = math.tanh %34 : vector<2x128xf32>
    %cst_9 = arith.constant 5.000000e-01 : f32
    %36 = vector.broadcast %cst_9 : f32 to vector<2x128xf32>
    %37 = arith.mulf %36, %35 : vector<2x128xf32>
    %cst_10 = arith.constant 5.000000e-01 : f32
    %38 = vector.broadcast %cst_10 : f32 to vector<2x128xf32>
    %39 = arith.addf %38, %37 : vector<2x128xf32>
    %40 = arith.select %5, %35, %39 : vector<2x128xi1>, vector<2x128xf32>
    %41 = vector.extract_strided_slice %40 {offsets = [0, 0], sizes = [2, 32], strides = [1, 1]} : vector<2x128xf32> to vector<2x32xf32>
    %42 = vector.extract_strided_slice %40 {offsets = [0, 32], sizes = [2, 32], strides = [1, 1]} : vector<2x128xf32> to vector<2x32xf32>
    %43 = vector.extract_strided_slice %40 {offsets = [0, 64], sizes = [2, 32], strides = [1, 1]} : vector<2x128xf32> to vector<2x32xf32>
    %44 = vector.extract_strided_slice %40 {offsets = [0, 96], sizes = [2, 32], strides = [1, 1]} : vector<2x128xf32> to vector<2x32xf32>
    %45 = arith.mulf %42, %25 : vector<2x32xf32>
    %46 = arith.mulf %41, %43 : vector<2x32xf32>
    %47 = arith.addf %45, %46 : vector<2x32xf32>
    %48 = math.tanh %47 : vector<2x32xf32>
    %49 = arith.mulf %44, %48 : vector<2x32xf32>
    %50 = arith.index_cast %30 : i32 to index
    %c0_11 = arith.constant 0 : index
    %51 = vector.load %arg10[%50, %c0_11] : memref<8x32xf32, #tpu.memory_space<vmem>>, vector<2x32xf32>
    tpu.vector_store %arg10[%50, %c0_11], %49 {strides = array<i32>} : memref<8x32xf32, #tpu.memory_space<vmem>>, vector<2x32xf32>,
    %c2_i32_12 = arith.constant 2 : i32
    %c2_i32_13 = arith.constant 2 : i32
    %52 = arith.muli %c2_i32_12, %c2_i32_13 : i32
    %53 = arith.index_cast %52 : i32 to index
    %c0_14 = arith.constant 0 : index
    %54 = vector.load %arg1[%53, %c0_14] : memref<8x128xf32, #tpu.memory_space<vmem>>, vector<2x128xf32>
    %cst_15 = arith.constant dense<0.000000e+00> : vector<2x128xf32>
    %55 = tpu.matmul %49, %7, %cst_15 {dimension_numbers = #tpu.dot_dimension_numbers<[1], [0], [0], [1], [0, 0, 1, 1], [], []>} : vector<2x32xf32>, vector<32x128xf32>, vector<2x128xf32> -> vector<2x128xf32>
    %56 = arith.addf %54, %55 : vector<2x128xf32>
    %57 = math.tanh %56 : vector<2x128xf32>
    %cst_16 = arith.constant 5.000000e-01 : f32
    %58 = vector.broadcast %cst_16 : f32 to vector<2x128xf32>
    %59 = arith.mulf %58, %57 : vector<2x128xf32>
    %cst_17 = arith.constant 5.000000e-01 : f32
    %60 = vector.broadcast %cst_17 : f32 to vector<2x128xf32>
    %61 = arith.addf %60, %59 : vector<2x128xf32>
    %62 = arith.select %5, %57, %61 : vector<2x128xi1>, vector<2x128xf32>
    %63 = vector.extract_strided_slice %62 {offsets = [0, 0], sizes = [2, 32], strides = [1, 1]} : vector<2x128xf32> to vector<2x32xf32>
    %64 = vector.extract_strided_slice %62 {offsets = [0, 32], sizes = [2, 32], strides = [1, 1]} : vector<2x128xf32> to vector<2x32xf32>
    %65 = vector.extract_strided_slice %62 {offsets = [0, 64], sizes = [2, 32], strides = [1, 1]} : vector<2x128xf32> to vector<2x32xf32>
    %66 = vector.extract_strided_slice %62 {offsets = [0, 96], sizes = [2, 32], strides = [1, 1]} : vector<2x128xf32> to vector<2x32xf32>
    %67 = arith.mulf %64, %47 : vector<2x32xf32>
    %68 = arith.mulf %63, %65 : vector<2x32xf32>
    %69 = arith.addf %67, %68 : vector<2x32xf32>
    %70 = math.tanh %69 : vector<2x32xf32>
    %71 = arith.mulf %66, %70 : vector<2x32xf32>
    %72 = arith.index_cast %52 : i32 to index
    %c0_18 = arith.constant 0 : index
    %73 = vector.load %arg10[%72, %c0_18] : memref<8x32xf32, #tpu.memory_space<vmem>>, vector<2x32xf32>
    tpu.vector_store %arg10[%72, %c0_18], %71 {strides = array<i32>} : memref<8x32xf32, #tpu.memory_space<vmem>>, vector<2x32xf32>,
    %c3_i32 = arith.constant 3 : i32
    %c2_i32_19 = arith.constant 2 : i32
    %74 = arith.muli %c3_i32, %c2_i32_19 : i32
    %75 = arith.index_cast %74 : i32 to index
    %c0_20 = arith.constant 0 : index
    %76 = vector.load %arg1[%75, %c0_20] : memref<8x128xf32, #tpu.memory_space<vmem>>, vector<2x128xf32>
    %cst_21 = arith.constant dense<0.000000e+00> : vector<2x128xf32>
    %77 = tpu.matmul %71, %7, %cst_21 {dimension_numbers = #tpu.dot_dimension_numbers<[1], [0], [0], [1], [0, 0, 1, 1], [], []>} : vector<2x32xf32>, vector<32x128xf32>, vector<2x128xf32> -> vector<2x128xf32>
    %78 = arith.addf %76, %77 : vector<2x128xf32>
    %79 = math.tanh %78 : vector<2x128xf32>
    %cst_22 = arith.constant 5.000000e-01 : f32
    %80 = vector.broadcast %cst_22 : f32 to vector<2x128xf32>
    %81 = arith.mulf %80, %79 : vector<2x128xf32>
    %cst_23 = arith.constant 5.000000e-01 : f32
    %82 = vector.broadcast %cst_23 : f32 to vector<2x128xf32>
    %83 = arith.addf %82, %81 : vector<2x128xf32>
    %84 = arith.select %5, %79, %83 : vector<2x128xi1>, vector<2x128xf32>
    %85 = vector.extract_strided_slice %84 {offsets = [0, 0], sizes = [2, 32], strides = [1, 1]} : vector<2x128xf32> to vector<2x32xf32>
    %86 = vector.extract_strided_slice %84 {offsets = [0, 32], sizes = [2, 32], strides = [1, 1]} : vector<2x128xf32> to vector<2x32xf32>
    %87 = vector.extract_strided_slice %84 {offsets = [0, 64], sizes = [2, 32], strides = [1, 1]} : vector<2x128xf32> to vector<2x32xf32>
    %88 = vector.extract_strided_slice %84 {offsets = [0, 96], sizes = [2, 32], strides = [1, 1]} : vector<2x128xf32> to vector<2x32xf32>
    %89 = arith.mulf %86, %69 : vector<2x32xf32>
    %90 = arith.mulf %85, %87 : vector<2x32xf32>
    %91 = arith.addf %89, %90 : vector<2x32xf32>
    %92 = math.tanh %91 : vector<2x32xf32>
    %93 = arith.mulf %88, %92 : vector<2x32xf32>
    %94 = arith.index_cast %74 : i32 to index
    %c0_24 = arith.constant 0 : index
    %95 = vector.load %arg10[%94, %c0_24] : memref<8x32xf32, #tpu.memory_space<vmem>>, vector<2x32xf32>
    tpu.vector_store %arg10[%94, %c0_24], %93 {strides = array<i32>} : memref<8x32xf32, #tpu.memory_space<vmem>>, vector<2x32xf32>,
    %c4_i32 = arith.constant 4 : i32
    %c0_25 = arith.constant 0 : index
    %c0_26 = arith.constant 0 : index
    %96 = vector.load %arg10[%c0_25, %c0_26] : memref<8x32xf32, #tpu.memory_space<vmem>>, vector<8x32xf32>
    %c0_27 = arith.constant 0 : index
    %c0_28 = arith.constant 0 : index
    %97 = vector.load %arg3[%c0_27, %c0_28] : memref<32x128xf32, #tpu.memory_space<vmem>>, vector<32x128xf32>
    %cst_29 = arith.constant dense<0.000000e+00> : vector<8x128xf32>
    %98 = tpu.matmul %96, %97, %cst_29 {dimension_numbers = #tpu.dot_dimension_numbers<[1], [0], [0], [1], [0, 0, 1, 1], [], []>} : vector<8x32xf32>, vector<32x128xf32>, vector<8x128xf32> -> vector<8x128xf32>
    %c0_30 = arith.constant 0 : index
    %c0_31 = arith.constant 0 : index
    %99 = vector.load %arg5[%c0_30, %c0_31] : memref<1x128xf32, #tpu.memory_space<vmem>>, vector<1x128xf32>
    %100 = vector.broadcast %99 : vector<1x128xf32> to vector<8x128xf32>
    %101 = arith.addf %98, %100 : vector<8x128xf32>
    %c0_32 = arith.constant 0 : index
    %c0_33 = arith.constant 0 : index
    %102 = vector.load %arg9[%c0_32, %c0_33] : memref<8x128xf32, #tpu.memory_space<vmem>>, vector<8x128xf32>
    tpu.vector_store %arg9[%c0_32, %c0_33], %101 {strides = array<i32>} : memref<8x128xf32, #tpu.memory_space<vmem>>, vector<8x128xf32>,
    %c0_34 = arith.constant 0 : index
    %c0_35 = arith.constant 0 : index
    %103 = vector.load %arg4[%c0_34, %c0_35] : memref<32x128xf32, #tpu.memory_space<vmem>>, vector<32x128xf32>
    %c0_i32_36 = arith.constant 0 : i32
    %c2_i32_37 = arith.constant 2 : i32
    %104 = arith.muli %c0_i32_36, %c2_i32_37 : i32
    %105 = arith.index_cast %104 : i32 to index
    %c0_38 = arith.constant 0 : index
    %106 = vector.load %arg9[%105, %c0_38] : memref<8x128xf32, #tpu.memory_space<vmem>>, vector<2x128xf32>
    %cst_39 = arith.constant dense<0.000000e+00> : vector<2x128xf32>
    %107 = tpu.matmul %6, %103, %cst_39 {dimension_numbers = #tpu.dot_dimension_numbers<[1], [0], [0], [1], [0, 0, 1, 1], [], []>} : vector<2x32xf32>, vector<32x128xf32>, vector<2x128xf32> -> vector<2x128xf32>
    %108 = arith.addf %106, %107 : vector<2x128xf32>
    %109 = math.tanh %108 : vector<2x128xf32>
    %cst_40 = arith.constant 5.000000e-01 : f32
    %110 = vector.broadcast %cst_40 : f32 to vector<2x128xf32>
    %111 = arith.mulf %110, %109 : vector<2x128xf32>
    %cst_41 = arith.constant 5.000000e-01 : f32
    %112 = vector.broadcast %cst_41 : f32 to vector<2x128xf32>
    %113 = arith.addf %112, %111 : vector<2x128xf32>
    %114 = arith.select %5, %109, %113 : vector<2x128xi1>, vector<2x128xf32>
    %115 = vector.extract_strided_slice %114 {offsets = [0, 0], sizes = [2, 32], strides = [1, 1]} : vector<2x128xf32> to vector<2x32xf32>
    %116 = vector.extract_strided_slice %114 {offsets = [0, 32], sizes = [2, 32], strides = [1, 1]} : vector<2x128xf32> to vector<2x32xf32>
    %117 = vector.extract_strided_slice %114 {offsets = [0, 64], sizes = [2, 32], strides = [1, 1]} : vector<2x128xf32> to vector<2x32xf32>
    %118 = vector.extract_strided_slice %114 {offsets = [0, 96], sizes = [2, 32], strides = [1, 1]} : vector<2x128xf32> to vector<2x32xf32>
    %119 = arith.mulf %116, %6 : vector<2x32xf32>
    %120 = arith.mulf %115, %117 : vector<2x32xf32>
    %121 = arith.addf %119, %120 : vector<2x32xf32>
    %122 = math.tanh %121 : vector<2x32xf32>
    %123 = arith.mulf %118, %122 : vector<2x32xf32>
    %124 = arith.index_cast %104 : i32 to index
    %c0_42 = arith.constant 0 : index
    %125 = vector.load %arg10[%124, %c0_42] : memref<8x32xf32, #tpu.memory_space<vmem>>, vector<2x32xf32>
    tpu.vector_store %arg10[%124, %c0_42], %123 {strides = array<i32>} : memref<8x32xf32, #tpu.memory_space<vmem>>, vector<2x32xf32>,
    %c1_i32_43 = arith.constant 1 : i32
    %c2_i32_44 = arith.constant 2 : i32
    %126 = arith.muli %c1_i32_43, %c2_i32_44 : i32
    %127 = arith.index_cast %126 : i32 to index
    %c0_45 = arith.constant 0 : index
    %128 = vector.load %arg9[%127, %c0_45] : memref<8x128xf32, #tpu.memory_space<vmem>>, vector<2x128xf32>
    %cst_46 = arith.constant dense<0.000000e+00> : vector<2x128xf32>
    %129 = tpu.matmul %123, %103, %cst_46 {dimension_numbers = #tpu.dot_dimension_numbers<[1], [0], [0], [1], [0, 0, 1, 1], [], []>} : vector<2x32xf32>, vector<32x128xf32>, vector<2x128xf32> -> vector<2x128xf32>
    %130 = arith.addf %128, %129 : vector<2x128xf32>
    %131 = math.tanh %130 : vector<2x128xf32>
    %cst_47 = arith.constant 5.000000e-01 : f32
    %132 = vector.broadcast %cst_47 : f32 to vector<2x128xf32>
    %133 = arith.mulf %132, %131 : vector<2x128xf32>
    %cst_48 = arith.constant 5.000000e-01 : f32
    %134 = vector.broadcast %cst_48 : f32 to vector<2x128xf32>
    %135 = arith.addf %134, %133 : vector<2x128xf32>
    %136 = arith.select %5, %131, %135 : vector<2x128xi1>, vector<2x128xf32>
    %137 = vector.extract_strided_slice %136 {offsets = [0, 0], sizes = [2, 32], strides = [1, 1]} : vector<2x128xf32> to vector<2x32xf32>
    %138 = vector.extract_strided_slice %136 {offsets = [0, 32], sizes = [2, 32], strides = [1, 1]} : vector<2x128xf32> to vector<2x32xf32>
    %139 = vector.extract_strided_slice %136 {offsets = [0, 64], sizes = [2, 32], strides = [1, 1]} : vector<2x128xf32> to vector<2x32xf32>
    %140 = vector.extract_strided_slice %136 {offsets = [0, 96], sizes = [2, 32], strides = [1, 1]} : vector<2x128xf32> to vector<2x32xf32>
    %141 = arith.mulf %138, %121 : vector<2x32xf32>
    %142 = arith.mulf %137, %139 : vector<2x32xf32>
    %143 = arith.addf %141, %142 : vector<2x32xf32>
    %144 = math.tanh %143 : vector<2x32xf32>
    %145 = arith.mulf %140, %144 : vector<2x32xf32>
    %146 = arith.index_cast %126 : i32 to index
    %c0_49 = arith.constant 0 : index
    %147 = vector.load %arg10[%146, %c0_49] : memref<8x32xf32, #tpu.memory_space<vmem>>, vector<2x32xf32>
    tpu.vector_store %arg10[%146, %c0_49], %145 {strides = array<i32>} : memref<8x32xf32, #tpu.memory_space<vmem>>, vector<2x32xf32>,
    %c2_i32_50 = arith.constant 2 : i32
    %c2_i32_51 = arith.constant 2 : i32
    %148 = arith.muli %c2_i32_50, %c2_i32_51 : i32
    %149 = arith.index_cast %148 : i32 to index
    %c0_52 = arith.constant 0 : index
    %150 = vector.load %arg9[%149, %c0_52] : memref<8x128xf32, #tpu.memory_space<vmem>>, vector<2x128xf32>
    %cst_53 = arith.constant dense<0.000000e+00> : vector<2x128xf32>
    %151 = tpu.matmul %145, %103, %cst_53 {dimension_numbers = #tpu.dot_dimension_numbers<[1], [0], [0], [1], [0, 0, 1, 1], [], []>} : vector<2x32xf32>, vector<32x128xf32>, vector<2x128xf32> -> vector<2x128xf32>
    %152 = arith.addf %150, %151 : vector<2x128xf32>
    %153 = math.tanh %152 : vector<2x128xf32>
    %cst_54 = arith.constant 5.000000e-01 : f32
    %154 = vector.broadcast %cst_54 : f32 to vector<2x128xf32>
    %155 = arith.mulf %154, %153 : vector<2x128xf32>
    %cst_55 = arith.constant 5.000000e-01 : f32
    %156 = vector.broadcast %cst_55 : f32 to vector<2x128xf32>
    %157 = arith.addf %156, %155 : vector<2x128xf32>
    %158 = arith.select %5, %153, %157 : vector<2x128xi1>, vector<2x128xf32>
    %159 = vector.extract_strided_slice %158 {offsets = [0, 0], sizes = [2, 32], strides = [1, 1]} : vector<2x128xf32> to vector<2x32xf32>
    %160 = vector.extract_strided_slice %158 {offsets = [0, 32], sizes = [2, 32], strides = [1, 1]} : vector<2x128xf32> to vector<2x32xf32>
    %161 = vector.extract_strided_slice %158 {offsets = [0, 64], sizes = [2, 32], strides = [1, 1]} : vector<2x128xf32> to vector<2x32xf32>
    %162 = vector.extract_strided_slice %158 {offsets = [0, 96], sizes = [2, 32], strides = [1, 1]} : vector<2x128xf32> to vector<2x32xf32>
    %163 = arith.mulf %160, %143 : vector<2x32xf32>
    %164 = arith.mulf %159, %161 : vector<2x32xf32>
    %165 = arith.addf %163, %164 : vector<2x32xf32>
    %166 = math.tanh %165 : vector<2x32xf32>
    %167 = arith.mulf %162, %166 : vector<2x32xf32>
    %168 = arith.index_cast %148 : i32 to index
    %c0_56 = arith.constant 0 : index
    %169 = vector.load %arg10[%168, %c0_56] : memref<8x32xf32, #tpu.memory_space<vmem>>, vector<2x32xf32>
    tpu.vector_store %arg10[%168, %c0_56], %167 {strides = array<i32>} : memref<8x32xf32, #tpu.memory_space<vmem>>, vector<2x32xf32>,
    %c3_i32_57 = arith.constant 3 : i32
    %c2_i32_58 = arith.constant 2 : i32
    %170 = arith.muli %c3_i32_57, %c2_i32_58 : i32
    %171 = arith.index_cast %170 : i32 to index
    %c0_59 = arith.constant 0 : index
    %172 = vector.load %arg9[%171, %c0_59] : memref<8x128xf32, #tpu.memory_space<vmem>>, vector<2x128xf32>
    %cst_60 = arith.constant dense<0.000000e+00> : vector<2x128xf32>
    %173 = tpu.matmul %167, %103, %cst_60 {dimension_numbers = #tpu.dot_dimension_numbers<[1], [0], [0], [1], [0, 0, 1, 1], [], []>} : vector<2x32xf32>, vector<32x128xf32>, vector<2x128xf32> -> vector<2x128xf32>
    %174 = arith.addf %172, %173 : vector<2x128xf32>
    %175 = math.tanh %174 : vector<2x128xf32>
    %cst_61 = arith.constant 5.000000e-01 : f32
    %176 = vector.broadcast %cst_61 : f32 to vector<2x128xf32>
    %177 = arith.mulf %176, %175 : vector<2x128xf32>
    %cst_62 = arith.constant 5.000000e-01 : f32
    %178 = vector.broadcast %cst_62 : f32 to vector<2x128xf32>
    %179 = arith.addf %178, %177 : vector<2x128xf32>
    %180 = arith.select %5, %175, %179 : vector<2x128xi1>, vector<2x128xf32>
    %181 = vector.extract_strided_slice %180 {offsets = [0, 0], sizes = [2, 32], strides = [1, 1]} : vector<2x128xf32> to vector<2x32xf32>
    %182 = vector.extract_strided_slice %180 {offsets = [0, 32], sizes = [2, 32], strides = [1, 1]} : vector<2x128xf32> to vector<2x32xf32>
    %183 = vector.extract_strided_slice %180 {offsets = [0, 64], sizes = [2, 32], strides = [1, 1]} : vector<2x128xf32> to vector<2x32xf32>
    %184 = vector.extract_strided_slice %180 {offsets = [0, 96], sizes = [2, 32], strides = [1, 1]} : vector<2x128xf32> to vector<2x32xf32>
    %185 = arith.mulf %182, %165 : vector<2x32xf32>
    %186 = arith.mulf %181, %183 : vector<2x32xf32>
    %187 = arith.addf %185, %186 : vector<2x32xf32>
    %188 = math.tanh %187 : vector<2x32xf32>
    %189 = arith.mulf %184, %188 : vector<2x32xf32>
    %190 = arith.index_cast %170 : i32 to index
    %c0_63 = arith.constant 0 : index
    %191 = vector.load %arg10[%190, %c0_63] : memref<8x32xf32, #tpu.memory_space<vmem>>, vector<2x32xf32>
    tpu.vector_store %arg10[%190, %c0_63], %189 {strides = array<i32>} : memref<8x32xf32, #tpu.memory_space<vmem>>, vector<2x32xf32>,
    %c4_i32_64 = arith.constant 4 : i32
    %c0_65 = arith.constant 0 : index
    %c0_66 = arith.constant 0 : index
    %192 = vector.load %arg10[%c0_65, %c0_66] : memref<8x32xf32, #tpu.memory_space<vmem>>, vector<8x32xf32>
    %c0_67 = arith.constant 0 : index
    %c0_68 = arith.constant 0 : index
    %193 = vector.load %arg6[%c0_67, %c0_68] : memref<32x128xf32, #tpu.memory_space<vmem>>, vector<32x128xf32>
    %cst_69 = arith.constant dense<0.000000e+00> : vector<8x128xf32>
    %194 = tpu.matmul %192, %193, %cst_69 {dimension_numbers = #tpu.dot_dimension_numbers<[1], [0], [0], [1], [0, 0, 1, 1], [], []>} : vector<8x32xf32>, vector<32x128xf32>, vector<8x128xf32> -> vector<8x128xf32>
    %c0_70 = arith.constant 0 : index
    %c0_71 = arith.constant 0 : index
    %195 = vector.load %arg7[%c0_70, %c0_71] : memref<1x128xf32, #tpu.memory_space<vmem>>, vector<1x128xf32>
    %196 = vector.broadcast %195 : vector<1x128xf32> to vector<8x128xf32>
    %197 = arith.addf %194, %196 : vector<8x128xf32>
    %c0_72 = arith.constant 0 : index
    %c0_73 = arith.constant 0 : index
    %198 = vector.load %arg8[%c0_72, %c0_73] : memref<8x128xf32, #tpu.memory_space<vmem>>, vector<8x128xf32>
    tpu.vector_store %arg8[%c0_72, %c0_73], %197 {strides = array<i32>} : memref<8x128xf32, #tpu.memory_space<vmem>>, vector<8x128xf32>,
    return
  }
  func.func @transform_0(%arg0: i32) -> (i32, i32) {
    %c0_i32 = arith.constant 0 : i32
    %c0_i32_0 = arith.constant 0 : i32
    return %arg0, %c0_i32 : i32, i32
  }
  func.func @transform_1(%arg0: i32) -> (i32, i32) {
    %c0_i32 = arith.constant 0 : i32
    %c0_i32_0 = arith.constant 0 : i32
    %c0_i32_1 = arith.constant 0 : i32
    return %c0_i32, %c0_i32_0 : i32, i32
  }
  func.func @transform_2(%arg0: i32) -> (i32, i32) {
    %c0_i32 = arith.constant 0 : i32
    %c0_i32_0 = arith.constant 0 : i32
    %c0_i32_1 = arith.constant 0 : i32
    return %c0_i32, %c0_i32_0 : i32, i32
  }
  func.func @transform_3(%arg0: i32) -> (i32, i32) {
    %c0_i32 = arith.constant 0 : i32
    %c0_i32_0 = arith.constant 0 : i32
    %c0_i32_1 = arith.constant 0 : i32
    return %c0_i32, %c0_i32_0 : i32, i32
  }
  func.func @transform_4(%arg0: i32) -> (i32, i32) {
    %c0_i32 = arith.constant 0 : i32
    %c0_i32_0 = arith.constant 0 : i32
    %c0_i32_1 = arith.constant 0 : i32
    return %c0_i32, %c0_i32_0 : i32, i32
  }
  func.func @transform_5(%arg0: i32) -> (i32, i32) {
    %c0_i32 = arith.constant 0 : i32
    %c0_i32_0 = arith.constant 0 : i32
    %c0_i32_1 = arith.constant 0 : i32
    return %c0_i32, %c0_i32_0 : i32, i32
  }
  func.func @transform_6(%arg0: i32) -> (i32, i32) {
    %c0_i32 = arith.constant 0 : i32
    %c0_i32_0 = arith.constant 0 : i32
    %c0_i32_1 = arith.constant 0 : i32
    return %c0_i32, %c0_i32_0 : i32, i32
  }
  func.func @transform_7(%arg0: i32) -> (i32, i32) {
    %c0_i32 = arith.constant 0 : i32
    %c0_i32_0 = arith.constant 0 : i32
    return %arg0, %c0_i32 : i32, i32
  }
}

</mosaic_0001>

<llo_original>
// kernel: iter_star_rgb_forward.2
$region0: #{iter_star_rgb_forward.2}
  #allocation0 [shape = 'u32[]', space=smem, size = 0x4, offset = 0x4, fixed_abs, tag = 'smem constant byte address 0x4 - core index']
  #allocation1 [shape = 'u32[72,128]{1,0:T(1,128)}', space=vmem, size = 0x9000, scoped, tag = 'internal scratch']
  %s0 = inlined_call_operand.vmem [shape: bf16[8,768], index: 0, kind: input, shape index: {}]
  %s1 = inlined_call_operand.vmem [shape: f32[3,3,1024], index: 1, kind: input, shape index: {}]
  %s2 = inlined_call_operand.vmem [shape: f32[3,1024], index: 2, kind: input, shape index: {}]
  %s3 = inlined_call_operand.hbm [shape: f32[1024,128], index: 3, kind: input, shape index: {}]
  %s4 = inlined_call_operand.vmem [shape: f32[1,128], index: 4, kind: input, shape index: {}]
  %s5 = inlined_call_operand.vmem [shape: f32[4], index: 5, kind: input, shape index: {}]
  %s6 = inlined_call_operand.vmem [shape: f32[8,128], index: 6, kind: output, shape index: {}]
  %s7 = sld [smem:[#allocation0]]
  $region42: #{iter_star_rgb_forward.2} parent=0
    _
  %s9 = ssub.s32 1, %s7
  %s10 = scalar_select 0, %s9, %s7
  $region1: #{iter_star_rgb_forward.2} parent=0
    #allocation2 [shape = 'u8[524288]{0}', space=vmem, size = 0x80000, scoped, tag = 'input window, operand 3, single buffered']
    #allocation3 [shape = 's32[1]{0}', space=sflag, size = 0x4, scoped, tag = 'scoped memory for iter_star_rgb_forward.2']
    #allocation4 [shape = 's32[1]{0}', space=sflag, size = 0x4, scoped, tag = 'scoped memory for iter_star_rgb_forward.2']
    #allocation5 [shape = 'u8[512]{0}', space=smem, size = 0x200, scoped, tag = 'input window, operand 5, single buffered']
    %11 = vsyncpa [#allocation3], 0
    %12 = vsyncpa [#allocation4], 0
    // Predicated region
    $region2: #{iter_star_rgb_forward.2} parent=1 // pred_check
      _
    $region3: #{iter_star_rgb_forward.2} parent=1 // pred_check_branch
      %14 = sbr.rel (0) target = $region5
    $region4: #{iter_star_rgb_forward.2} parent=1 // pred_region
      _
    $region5: #{iter_star_rgb_forward.2} parent=1 // pred_fallthru
      _
    // Predicated region
    $region6: #{iter_star_rgb_forward.2} parent=1 // pred_check
      _
    $region7: #{iter_star_rgb_forward.2} parent=1 // pred_check_branch
      %16 = sbr.rel (0) target = $region9
    $region8: #{iter_star_rgb_forward.2} parent=1 // pred_region
      _
    $region9: #{iter_star_rgb_forward.2} parent=1 // pred_fallthru
      _
    // Predicated region
    $region10: #{iter_star_rgb_forward.2} parent=1 // pred_check
      _
    $region11: #{iter_star_rgb_forward.2} parent=1 // pred_check_branch
      %18 = sbr.rel (0) target = $region13
    $region12: #{iter_star_rgb_forward.2} parent=1 // pred_region
      _
    $region13: #{iter_star_rgb_forward.2} parent=1 // pred_fallthru
      _
    // Predicated region
    $region14: #{iter_star_rgb_forward.2} parent=1 // pred_check
      _
    $region15: #{iter_star_rgb_forward.2} parent=1 // pred_check_branch
      %20 = sbr.rel (0) target = $region17
    $region16: #{iter_star_rgb_forward.2} parent=1 // pred_region
      %22 = vsyncadd [#allocation3], 0
      %s23 = sshll.u32 %s3, 4
      %s24 = int_to_ptr.hbm [resolvable:$true] %s23
      %s25 = sshll.u32 [#allocation2], 4
      %s26 = int_to_ptr.vmem [resolvable:$true] %s25
      %31 = dma.hbm_to_vmem [thread:$0]  %s24, 16384, %s26, [#allocation3], 128, 128, 8
    $region17: #{iter_star_rgb_forward.2} parent=1 // pred_fallthru
      _
    // Predicated region
    $region18: #{iter_star_rgb_forward.2} parent=1 // pred_check
      _
    $region19: #{iter_star_rgb_forward.2} parent=1 // pred_check_branch
      %33 = sbr.rel (0) target = $region21
    $region20: #{iter_star_rgb_forward.2} parent=1 // pred_region
      _
    $region21: #{iter_star_rgb_forward.2} parent=1 // pred_fallthru
      _
    // Predicated region
    $region22: #{iter_star_rgb_forward.2} parent=1 // pred_check
      _
    $region23: #{iter_star_rgb_forward.2} parent=1 // pred_check_branch
      %35 = sbr.rel (0) target = $region25
    $region24: #{iter_star_rgb_forward.2} parent=1 // pred_region
      %37 = vsyncadd [#allocation4], 0
      %s39 = sshll.u32 %s5, 4
      %s40 = int_to_ptr.vmem [resolvable:$true] %s39
      %42 = dma.vmem_to_smem %s40, 16, [#allocation5], [#allocation4]
    $region25: #{iter_star_rgb_forward.2} parent=1 // pred_fallthru
      _
    // Predicated region
    $region26: #{iter_star_rgb_forward.2} parent=1 // pred_check
      _
    $region27: #{iter_star_rgb_forward.2} parent=1 // pred_check_branch
      %44 = sbr.rel (0) target = $region29
    $region28: #{iter_star_rgb_forward.2} parent=1 // pred_region
      %46 = dma.done [#allocation3], 16384
    $region29: #{iter_star_rgb_forward.2} parent=1 // pred_fallthru
      _
    // Predicated region
    $region30: #{iter_star_rgb_forward.2} parent=1 // pred_check
      _
    $region31: #{iter_star_rgb_forward.2} parent=1 // pred_check_branch
      %48 = sbr.rel (0) target = $region33
    $region32: #{iter_star_rgb_forward.2} parent=1 // pred_region
      %50 = dma.done [#allocation4], 16
    $region33: #{iter_star_rgb_forward.2} parent=1 // pred_fallthru
      _
    %51 = sfence
    %v52 = vld [vmem:[%s0] sm:$0xff]
    %v53 = vld [vmem:[%s0 + $0x8] sm:$0xff]
    %v54 = vld [vmem:[%s0 + $0x10] sm:$0xff]
    %v55 = vunpack.c.l.bf16 %v52
    %v56 = vunpack.c.h.bf16 %v52
    %v57 = vunpack.c.l.bf16 %v53
    %v58 = vunpack.c.h.bf16 %v53
    %v59 = vunpack.c.l.bf16 %v54
    %v60 = vunpack.c.h.bf16 %v54
    %v61 = vadd.f32 %v55, %v56
    %62 = vadd.xlane.f32.xlu0 %v61
    %v63 = vpop.xlane.xlu0 %62
    %v64 = vrcp.pop 256.0
    %v65 = vmul.f32 256.0, %v64
    %v66 = vsub.f32 1.0, %v65
    %v67 = vmul.f32 %v64, %v66
    %v68 = vadd.f32 %v64, %v67
    %vm69 = vweird.f32 %v64
    %v70 = vsel %vm69, %v64, %v68
    %v71 = vmul.f32 %v63, %v70
    %v72 = vadd.f32 %v57, %v58
    %73 = vadd.xlane.f32.xlu0 %v72
    %v74 = vpop.xlane.xlu0 %73
    %v75 = vmul.f32 %v74, %v70
    %v76 = vadd.f32 %v59, %v60
    %77 = vadd.xlane.f32.xlu0 %v76
    %v78 = vpop.xlane.xlu0 %77
    %v79 = vmul.f32 %v78, %v70
    %v80 = vld [vmem:[%s1] sm:$0x77]
    %v81 = vld [vmem:[%s1 + $0x8] sm:$0x77]
    %v82 = vld [vmem:[%s1 + $0x10] sm:$0x77]
    %v83 = vld [vmem:[%s1 + $0x18] sm:$0x77]
    %v84 = vld [vmem:[%s2] ss:$4 sm:$0xff]
    %v89 = vperm.slane %v80, 0
    %v90 = vperm.slane %v80, 4
    %v91 = vperm.slane %v81, 0
    %v92 = vperm.slane %v81, 4
    %v93 = vperm.slane %v82, 0
    %v94 = vperm.slane %v82, 4
    %v95 = vperm.slane %v83, 0
    %v96 = vperm.slane %v83, 4
    %v105 = vperm.slane %v89, 0
    %v106 = vperm.slane %v90, 0
    %v107 = vperm.slane %v91, 0
    %v108 = vperm.slane %v92, 0
    %v109 = vperm.slane %v93, 0
    %v110 = vperm.slane %v94, 0
    %v111 = vperm.slane %v95, 0
    %v112 = vperm.slane %v96, 0
    %v113 = vmul.f32 %v71, %v105
    %v114 = vmul.f32 %v71, %v106
    %v115 = vmul.f32 %v71, %v107
    %v116 = vmul.f32 %v71, %v108
    %v117 = vmul.f32 %v71, %v109
    %v118 = vmul.f32 %v71, %v110
    %v119 = vmul.f32 %v71, %v111
    %v120 = vmul.f32 %v71, %v112
    %v122 = vperm.slane %v84, 0
    %v123 = vperm.slane %v84, 1
    %v124 = vperm.slane %v84, 2
    %v125 = vperm.slane %v84, 3
    %v126 = vperm.slane %v84, 4
    %v127 = vperm.slane %v84, 5
    %v128 = vperm.slane %v84, 6
    %v129 = vperm.slane %v84, 7
    %v138 = vadd.f32 %v122, %v113
    %v139 = vadd.f32 %v123, %v114
    %v140 = vadd.f32 %v124, %v115
    %v141 = vadd.f32 %v125, %v116
    %v142 = vadd.f32 %v126, %v117
    %v143 = vadd.f32 %v127, %v118
    %v144 = vadd.f32 %v128, %v119
    %v145 = vadd.f32 %v129, %v120
    %v146 = vperm.slane %v80, 1
    %v147 = vperm.slane %v80, 5
    %v148 = vperm.slane %v81, 1
    %v149 = vperm.slane %v81, 5
    %v150 = vperm.slane %v82, 1
    %v151 = vperm.slane %v82, 5
    %v152 = vperm.slane %v83, 1
    %v153 = vperm.slane %v83, 5
    %v162 = vperm.slane %v146, 1
    %v163 = vperm.slane %v147, 1
    %v164 = vperm.slane %v148, 1
    %v165 = vperm.slane %v149, 1
    %v166 = vperm.slane %v150, 1
    %v167 = vperm.slane %v151, 1
    %v168 = vperm.slane %v152, 1
    %v169 = vperm.slane %v153, 1
    %v170 = vmul.f32 %v75, %v162
    %v171 = vmul.f32 %v75, %v163
    %v172 = vmul.f32 %v75, %v164
    %v173 = vmul.f32 %v75, %v165
    %v174 = vmul.f32 %v75, %v166
    %v175 = vmul.f32 %v75, %v167
    %v176 = vmul.f32 %v75, %v168
    %v177 = vmul.f32 %v75, %v169
    %v178 = vadd.f32 %v138, %v170
    %v179 = vadd.f32 %v139, %v171
    %v180 = vadd.f32 %v140, %v172
    %v181 = vadd.f32 %v141, %v173
    %v182 = vadd.f32 %v142, %v174
    %v183 = vadd.f32 %v143, %v175
    %v184 = vadd.f32 %v144, %v176
    %v185 = vadd.f32 %v145, %v177
    %v186 = vperm.slane %v80, 2
    %v187 = vperm.slane %v80, 6
    %v188 = vperm.slane %v81, 2
    %v189 = vperm.slane %v81, 6
    %v190 = vperm.slane %v82, 2
    %v191 = vperm.slane %v82, 6
    %v192 = vperm.slane %v83, 2
    %v193 = vperm.slane %v83, 6
    %v202 = vperm.slane %v186, 2
    %v203 = vperm.slane %v187, 2
    %v204 = vperm.slane %v188, 2
    %v205 = vperm.slane %v189, 2
    %v206 = vperm.slane %v190, 2
    %v207 = vperm.slane %v191, 2
    %v208 = vperm.slane %v192, 2
    %v209 = vperm.slane %v193, 2
    %v210 = vmul.f32 %v79, %v202
    %v211 = vmul.f32 %v79, %v203
    %v212 = vmul.f32 %v79, %v204
    %v213 = vmul.f32 %v79, %v205
    %v214 = vmul.f32 %v79, %v206
    %v215 = vmul.f32 %v79, %v207
    %v216 = vmul.f32 %v79, %v208
    %v217 = vmul.f32 %v79, %v209
    %v218 = vadd.f32 %v178, %v210
    %v219 = vadd.f32 %v179, %v211
    %v220 = vadd.f32 %v180, %v212
    %v221 = vadd.f32 %v181, %v213
    %v222 = vadd.f32 %v182, %v214
    %v223 = vadd.f32 %v183, %v215
    %v224 = vadd.f32 %v184, %v216
    %v225 = vadd.f32 %v185, %v217
    %v226 = vmax.f32 %v218, 0.0
    %v227 = vmax.f32 %v219, 0.0
    %v228 = vmax.f32 %v220, 0.0
    %v229 = vmax.f32 %v221, 0.0
    %v230 = vmax.f32 %v222, 0.0
    %v231 = vmax.f32 %v223, 0.0
    %v232 = vmax.f32 %v224, 0.0
    %v233 = vmax.f32 %v225, 0.0
    %s234 = scalar_lea.vmem %s1, 32
    %v235 = vld [vmem:[%s234] sm:$0x77]
    %v236 = vld [vmem:[%s234 + $0x8] sm:$0x77]
    %v237 = vld [vmem:[%s234 + $0x10] sm:$0x77]
    %v238 = vld [vmem:[%s234 + $0x18] sm:$0x77]
    %s239 = scalar_lea.vmem %s2, 1
    %v240 = vld [vmem:[%s239] ss:$4 sm:$0xff]
    %v245 = vperm.slane %v235, 0
    %v246 = vperm.slane %v235, 4
    %v247 = vperm.slane %v236, 0
    %v248 = vperm.slane %v236, 4
    %v249 = vperm.slane %v237, 0
    %v250 = vperm.slane %v237, 4
    %v251 = vperm.slane %v238, 0
    %v252 = vperm.slane %v238, 4
    %v261 = vperm.slane %v245, 0
    %v262 = vperm.slane %v246, 0
    %v263 = vperm.slane %v247, 0
    %v264 = vperm.slane %v248, 0
    %v265 = vperm.slane %v249, 0
    %v266 = vperm.slane %v250, 0
    %v267 = vperm.slane %v251, 0
    %v268 = vperm.slane %v252, 0
    %v269 = vmul.f32 %v71, %v261
    %v270 = vmul.f32 %v71, %v262
    %v271 = vmul.f32 %v71, %v263
    %v272 = vmul.f32 %v71, %v264
    %v273 = vmul.f32 %v71, %v265
    %v274 = vmul.f32 %v71, %v266
    %v275 = vmul.f32 %v71, %v267
    %v276 = vmul.f32 %v71, %v268
    %v278 = vperm.slane %v240, 0
    %v279 = vperm.slane %v240, 1
    %v280 = vperm.slane %v240, 2
    %v281 = vperm.slane %v240, 3
    %v282 = vperm.slane %v240, 4
    %v283 = vperm.slane %v240, 5
    %v284 = vperm.slane %v240, 6
    %v285 = vperm.slane %v240, 7
    %v294 = vadd.f32 %v278, %v269
    %v295 = vadd.f32 %v279, %v270
    %v296 = vadd.f32 %v280, %v271
    %v297 = vadd.f32 %v281, %v272
    %v298 = vadd.f32 %v282, %v273
    %v299 = vadd.f32 %v283, %v274
    %v300 = vadd.f32 %v284, %v275
    %v301 = vadd.f32 %v285, %v276
    %v302 = vperm.slane %v235, 1
    %v303 = vperm.slane %v235, 5
    %v304 = vperm.slane %v236, 1
    %v305 = vperm.slane %v236, 5
    %v306 = vperm.slane %v237, 1
    %v307 = vperm.slane %v237, 5
    %v308 = vperm.slane %v238, 1
    %v309 = vperm.slane %v238, 5
    %v318 = vperm.slane %v302, 1
    %v319 = vperm.slane %v303, 1
    %v320 = vperm.slane %v304, 1
    %v321 = vperm.slane %v305, 1
    %v322 = vperm.slane %v306, 1
    %v323 = vperm.slane %v307, 1
    %v324 = vperm.slane %v308, 1
    %v325 = vperm.slane %v309, 1
    %v326 = vmul.f32 %v75, %v318
    %v327 = vmul.f32 %v75, %v319
    %v328 = vmul.f32 %v75, %v320
    %v329 = vmul.f32 %v75, %v321
    %v330 = vmul.f32 %v75, %v322
    %v331 = vmul.f32 %v75, %v323
    %v332 = vmul.f32 %v75, %v324
    %v333 = vmul.f32 %v75, %v325
    %v334 = vadd.f32 %v294, %v326
    %v335 = vadd.f32 %v295, %v327
    %v336 = vadd.f32 %v296, %v328
    %v337 = vadd.f32 %v297, %v329
    %v338 = vadd.f32 %v298, %v330
    %v339 = vadd.f32 %v299, %v331
    %v340 = vadd.f32 %v300, %v332
    %v341 = vadd.f32 %v301, %v333
    %v342 = vperm.slane %v235, 2
    %v343 = vperm.slane %v235, 6
    %v344 = vperm.slane %v236, 2
    %v345 = vperm.slane %v236, 6
    %v346 = vperm.slane %v237, 2
    %v347 = vperm.slane %v237, 6
    %v348 = vperm.slane %v238, 2
    %v349 = vperm.slane %v238, 6
    %v358 = vperm.slane %v342, 2
    %v359 = vperm.slane %v343, 2
    %v360 = vperm.slane %v344, 2
    %v361 = vperm.slane %v345, 2
    %v362 = vperm.slane %v346, 2
    %v363 = vperm.slane %v347, 2
    %v364 = vperm.slane %v348, 2
    %v365 = vperm.slane %v349, 2
    %v366 = vmul.f32 %v79, %v358
    %v367 = vmul.f32 %v79, %v359
    %v368 = vmul.f32 %v79, %v360
    %v369 = vmul.f32 %v79, %v361
    %v370 = vmul.f32 %v79, %v362
    %v371 = vmul.f32 %v79, %v363
    %v372 = vmul.f32 %v79, %v364
    %v373 = vmul.f32 %v79, %v365
    %v374 = vadd.f32 %v334, %v366
    %v375 = vadd.f32 %v335, %v367
    %v376 = vadd.f32 %v336, %v368
    %v377 = vadd.f32 %v337, %v369
    %v378 = vadd.f32 %v338, %v370
    %v379 = vadd.f32 %v339, %v371
    %v380 = vadd.f32 %v340, %v372
    %v381 = vadd.f32 %v341, %v373
    %v382 = vmax.f32 %v374, 0.0
    %v383 = vmax.f32 %v375, 0.0
    %v384 = vmax.f32 %v376, 0.0
    %v385 = vmax.f32 %v377, 0.0
    %v386 = vmax.f32 %v378, 0.0
    %v387 = vmax.f32 %v379, 0.0
    %v388 = vmax.f32 %v380, 0.0
    %v389 = vmax.f32 %v381, 0.0
    %s390 = scalar_lea.vmem %s1, 64
    %v391 = vld [vmem:[%s390] sm:$0x77]
    %v392 = vld [vmem:[%s390 + $0x8] sm:$0x77]
    %v393 = vld [vmem:[%s390 + $0x10] sm:$0x77]
    %v394 = vld [vmem:[%s390 + $0x18] sm:$0x77]
    %s395 = scalar_lea.vmem %s2, 2
    %v396 = vld [vmem:[%s395] ss:$4 sm:$0xff]
    %v401 = vperm.slane %v391, 0
    %v402 = vperm.slane %v391, 4
    %v403 = vperm.slane %v392, 0
    %v404 = vperm.slane %v392, 4
    %v405 = vperm.slane %v393, 0
    %v406 = vperm.slane %v393, 4
    %v407 = vperm.slane %v394, 0
    %v408 = vperm.slane %v394, 4
    %v417 = vperm.slane %v401, 0
    %v418 = vperm.slane %v402, 0
    %v419 = vperm.slane %v403, 0
    %v420 = vperm.slane %v404, 0
    %v421 = vperm.slane %v405, 0
    %v422 = vperm.slane %v406, 0
    %v423 = vperm.slane %v407, 0
    %v424 = vperm.slane %v408, 0
    %v425 = vmul.f32 %v71, %v417
    %v426 = vmul.f32 %v71, %v418
    %v427 = vmul.f32 %v71, %v419
    %v428 = vmul.f32 %v71, %v420
    %v429 = vmul.f32 %v71, %v421
    %v430 = vmul.f32 %v71, %v422
    %v431 = vmul.f32 %v71, %v423
    %v432 = vmul.f32 %v71, %v424
    %v434 = vperm.slane %v396, 0
    %v435 = vperm.slane %v396, 1
    %v436 = vperm.slane %v396, 2
    %v437 = vperm.slane %v396, 3
    %v438 = vperm.slane %v396, 4
    %v439 = vperm.slane %v396, 5
    %v440 = vperm.slane %v396, 6
    %v441 = vperm.slane %v396, 7
    %v450 = vadd.f32 %v434, %v425
    %v451 = vadd.f32 %v435, %v426
    %v452 = vadd.f32 %v436, %v427
    %v453 = vadd.f32 %v437, %v428
    %v454 = vadd.f32 %v438, %v429
    %v455 = vadd.f32 %v439, %v430
    %v456 = vadd.f32 %v440, %v431
    %v457 = vadd.f32 %v441, %v432
    %v458 = vperm.slane %v391, 1
    %v459 = vperm.slane %v391, 5
    %v460 = vperm.slane %v392, 1
    %v461 = vperm.slane %v392, 5
    %v462 = vperm.slane %v393, 1
    %v463 = vperm.slane %v393, 5
    %v464 = vperm.slane %v394, 1
    %v465 = vperm.slane %v394, 5
    %v474 = vperm.slane %v458, 1
    %v475 = vperm.slane %v459, 1
    %v476 = vperm.slane %v460, 1
    %v477 = vperm.slane %v461, 1
    %v478 = vperm.slane %v462, 1
    %v479 = vperm.slane %v463, 1
    %v480 = vperm.slane %v464, 1
    %v481 = vperm.slane %v465, 1
    %v482 = vmul.f32 %v75, %v474
    %v483 = vmul.f32 %v75, %v475
    %v484 = vmul.f32 %v75, %v476
    %v485 = vmul.f32 %v75, %v477
    %v486 = vmul.f32 %v75, %v478
    %v487 = vmul.f32 %v75, %v479
    %v488 = vmul.f32 %v75, %v480
    %v489 = vmul.f32 %v75, %v481
    %v490 = vadd.f32 %v450, %v482
    %v491 = vadd.f32 %v451, %v483
    %v492 = vadd.f32 %v452, %v484
    %v493 = vadd.f32 %v453, %v485
    %v494 = vadd.f32 %v454, %v486
    %v495 = vadd.f32 %v455, %v487
    %v496 = vadd.f32 %v456, %v488
    %v497 = vadd.f32 %v457, %v489
    %v498 = vperm.slane %v391, 2
    %v499 = vperm.slane %v391, 6
    %v500 = vperm.slane %v392, 2
    %v501 = vperm.slane %v392, 6
    %v502 = vperm.slane %v393, 2
    %v503 = vperm.slane %v393, 6
    %v504 = vperm.slane %v394, 2
    %v505 = vperm.slane %v394, 6
    %v514 = vperm.slane %v498, 2
    %v515 = vperm.slane %v499, 2
    %v516 = vperm.slane %v500, 2
    %v517 = vperm.slane %v501, 2
    %v518 = vperm.slane %v502, 2
    %v519 = vperm.slane %v503, 2
    %v520 = vperm.slane %v504, 2
    %v521 = vperm.slane %v505, 2
    %v522 = vmul.f32 %v79, %v514
    %v523 = vmul.f32 %v79, %v515
    %v524 = vmul.f32 %v79, %v516
    %v525 = vmul.f32 %v79, %v517
    %v526 = vmul.f32 %v79, %v518
    %v527 = vmul.f32 %v79, %v519
    %v528 = vmul.f32 %v79, %v520
    %v529 = vmul.f32 %v79, %v521
    %v530 = vadd.f32 %v490, %v522
    %v531 = vadd.f32 %v491, %v523
    %v532 = vadd.f32 %v492, %v524
    %v533 = vadd.f32 %v493, %v525
    %v534 = vadd.f32 %v494, %v526
    %v535 = vadd.f32 %v495, %v527
    %v536 = vadd.f32 %v496, %v528
    %v537 = vadd.f32 %v497, %v529
    %v538 = vmax.f32 %v530, 0.0
    %v539 = vmax.f32 %v531, 0.0
    %v540 = vmax.f32 %v532, 0.0
    %v541 = vmax.f32 %v533, 0.0
    %v542 = vmax.f32 %v534, 0.0
    %v543 = vmax.f32 %v535, 0.0
    %v544 = vmax.f32 %v536, 0.0
    %v545 = vmax.f32 %v537, 0.0
    %s546 = sld [smem:[#allocation5]]
    %v547 = vstv %s546
    %v548 = vmul.f32 %v547, %v226
    %v549 = vmul.f32 %v547, %v227
    %v550 = vmul.f32 %v547, %v228
    %v551 = vmul.f32 %v547, %v229
    %v552 = vmul.f32 %v547, %v230
    %v553 = vmul.f32 %v547, %v231
    %v554 = vmul.f32 %v547, %v232
    %v555 = vmul.f32 %v547, %v233
    %s556 = sld [smem:[#allocation5 + $0x1]]
    %v557 = vstv %s556
    %v558 = vmul.f32 %v557, %v382
    %v559 = vmul.f32 %v557, %v383
    %v560 = vmul.f32 %v557, %v384
    %v561 = vmul.f32 %v557, %v385
    %v562 = vmul.f32 %v557, %v386
    %v563 = vmul.f32 %v557, %v387
    %v564 = vmul.f32 %v557, %v388
    %v565 = vmul.f32 %v557, %v389
    %v566 = vadd.f32 %v548, %v558
    %v567 = vadd.f32 %v549, %v559
    %v568 = vadd.f32 %v550, %v560
    %v569 = vadd.f32 %v551, %v561
    %v570 = vadd.f32 %v552, %v562
    %v571 = vadd.f32 %v553, %v563
    %v572 = vadd.f32 %v554, %v564
    %v573 = vadd.f32 %v555, %v565
    %s574 = sld [smem:[#allocation5 + $0x2]]
    %v575 = vstv %s574
    %v576 = vmul.f32 %v575, %v538
    %v577 = vmul.f32 %v575, %v539
    %v578 = vmul.f32 %v575, %v540
    %v579 = vmul.f32 %v575, %v541
    %v580 = vmul.f32 %v575, %v542
    %v581 = vmul.f32 %v575, %v543
    %v582 = vmul.f32 %v575, %v544
    %v583 = vmul.f32 %v575, %v545
    %v584 = vadd.f32 %v566, %v576
    %v585 = vadd.f32 %v567, %v577
    %v586 = vadd.f32 %v568, %v578
    %v587 = vadd.f32 %v569, %v579
    %v588 = vadd.f32 %v570, %v580
    %v589 = vadd.f32 %v571, %v581
    %v590 = vadd.f32 %v572, %v582
    %v591 = vadd.f32 %v573, %v583
    %s592 = sld [smem:[#allocation5 + $0x3]]
    %v593 = vstv %s592
    %v594 = vadd.f32 %v584, %v593
    %v595 = vadd.f32 %v585, %v593
    %v596 = vadd.f32 %v586, %v593
    %v597 = vadd.f32 %v587, %v593
    %v598 = vadd.f32 %v588, %v593
    %v599 = vadd.f32 %v589, %v593
    %v600 = vadd.f32 %v590, %v593
    %v601 = vadd.f32 %v591, %v593
    %v602 = vmax.f32 %v594, 0.0
    %v603 = vmax.f32 %v595, 0.0
    %v604 = vmax.f32 %v596, 0.0
    %v605 = vmax.f32 %v597, 0.0
    %v606 = vmax.f32 %v598, 0.0
    %v607 = vmax.f32 %v599, 0.0
    %v608 = vmax.f32 %v600, 0.0
    %v609 = vmax.f32 %v601, 0.0
    %v610 = vld [vmem:[#allocation2] sm:$0xff]
    %v611 = vld [vmem:[#allocation2 + $0x8] sm:$0xff]
    %v612 = vld [vmem:[#allocation2 + $0x10] sm:$0xff]
    %v613 = vld [vmem:[#allocation2 + $0x18] sm:$0xff]
    %v614 = vld [vmem:[#allocation2 + $0x20] sm:$0xff]
    %v615 = vld [vmem:[#allocation2 + $0x28] sm:$0xff]
    %v616 = vld [vmem:[#allocation2 + $0x30] sm:$0xff]
    %v617 = vld [vmem:[#allocation2 + $0x38] sm:$0xff]
    %v618 = vld [vmem:[#allocation2 + $0x40] sm:$0xff]
    %v619 = vld [vmem:[#allocation2 + $0x48] sm:$0xff]
    %v620 = vld [vmem:[#allocation2 + $0x50] sm:$0xff]
    %v621 = vld [vmem:[#allocation2 + $0x58] sm:$0xff]
    %v622 = vld [vmem:[#allocation2 + $0x60] sm:$0xff]
    %v623 = vld [vmem:[#allocation2 + $0x68] sm:$0xff]
    %v624 = vld [vmem:[#allocation2 + $0x70] sm:$0xff]
    %v625 = vld [vmem:[#allocation2 + $0x78] sm:$0xff]
    %v626 = vld [vmem:[#allocation2 + $0x80] sm:$0xff]
    %v627 = vld [vmem:[#allocation2 + $0x88] sm:$0xff]
    %v628 = vld [vmem:[#allocation2 + $0x90] sm:$0xff]
    %v629 = vld [vmem:[#allocation2 + $0x98] sm:$0xff]
    %v630 = vld [vmem:[#allocation2 + $0xa0] sm:$0xff]
    %v631 = vld [vmem:[#allocation2 + $0xa8] sm:$0xff]
    %v632 = vld [vmem:[#allocation2 + $0xb0] sm:$0xff]
    %v633 = vld [vmem:[#allocation2 + $0xb8] sm:$0xff]
    %v634 = vld [vmem:[#allocation2 + $0xc0] sm:$0xff]
    %v635 = vld [vmem:[#allocation2 + $0xc8] sm:$0xff]
    %v636 = vld [vmem:[#allocation2 + $0xd0] sm:$0xff]
    %v637 = vld [vmem:[#allocation2 + $0xd8] sm:$0xff]
    %v638 = vld [vmem:[#allocation2 + $0xe0] sm:$0xff]
    %v639 = vld [vmem:[#allocation2 + $0xe8] sm:$0xff]
    %v640 = vld [vmem:[#allocation2 + $0xf0] sm:$0xff]
    %v641 = vld [vmem:[#allocation2 + $0xf8] sm:$0xff]
    %v642 = vld [vmem:[#allocation2 + $0x100] sm:$0xff]
    %v643 = vld [vmem:[#allocation2 + $0x108] sm:$0xff]
    %v644 = vld [vmem:[#allocation2 + $0x110] sm:$0xff]
    %v645 = vld [vmem:[#allocation2 + $0x118] sm:$0xff]
    %v646 = vld [vmem:[#allocation2 + $0x120] sm:$0xff]
    %v647 = vld [vmem:[#allocation2 + $0x128] sm:$0xff]
    %v648 = vld [vmem:[#allocation2 + $0x130] sm:$0xff]
    %v649 = vld [vmem:[#allocation2 + $0x138] sm:$0xff]
    %v650 = vld [vmem:[#allocation2 + $0x140] sm:$0xff]
    %v651 = vld [vmem:[#allocation2 + $0x148] sm:$0xff]
    %v652 = vld [vmem:[#allocation2 + $0x150] sm:$0xff]
    %v653 = vld [vmem:[#allocation2 + $0x158] sm:$0xff]
    %v654 = vld [vmem:[#allocation2 + $0x160] sm:$0xff]
    %v655 = vld [vmem:[#allocation2 + $0x168] sm:$0xff]
    %v656 = vld [vmem:[#allocation2 + $0x170] sm:$0xff]
    %v657 = vld [vmem:[#allocation2 + $0x178] sm:$0xff]
    %v658 = vld [vmem:[#allocation2 + $0x180] sm:$0xff]
    %v659 = vld [vmem:[#allocation2 + $0x188] sm:$0xff]
    %v660 = vld [vmem:[#allocation2 + $0x190] sm:$0xff]
    %v661 = vld [vmem:[#allocation2 + $0x198] sm:$0xff]
    %v662 = vld [vmem:[#allocation2 + $0x1a0] sm:$0xff]
    %v663 = vld [vmem:[#allocation2 + $0x1a8] sm:$0xff]
    %v664 = vld [vmem:[#allocation2 + $0x1b0] sm:$0xff]
    %v665 = vld [vmem:[#allocation2 + $0x1b8] sm:$0xff]
    %v666 = vld [vmem:[#allocation2 + $0x1c0] sm:$0xff]
    %v667 = vld [vmem:[#allocation2 + $0x1c8] sm:$0xff]
    %v668 = vld [vmem:[#allocation2 + $0x1d0] sm:$0xff]
    %v669 = vld [vmem:[#allocation2 + $0x1d8] sm:$0xff]
    %v670 = vld [vmem:[#allocation2 + $0x1e0] sm:$0xff]
    %v671 = vld [vmem:[#allocation2 + $0x1e8] sm:$0xff]
    %v672 = vld [vmem:[#allocation2 + $0x1f0] sm:$0xff]
    %v673 = vld [vmem:[#allocation2 + $0x1f8] sm:$0xff]
    %v674 = vld [vmem:[#allocation2 + $0x200] sm:$0xff]
    %v675 = vld [vmem:[#allocation2 + $0x208] sm:$0xff]
    %v676 = vld [vmem:[#allocation2 + $0x210] sm:$0xff]
    %v677 = vld [vmem:[#allocation2 + $0x218] sm:$0xff]
    %v678 = vld [vmem:[#allocation2 + $0x220] sm:$0xff]
    %v679 = vld [vmem:[#allocation2 + $0x228] sm:$0xff]
    %v680 = vld [vmem:[#allocation2 + $0x230] sm:$0xff]
    %v681 = vld [vmem:[#allocation2 + $0x238] sm:$0xff]
    %v682 = vld [vmem:[#allocation2 + $0x240] sm:$0xff]
    %v683 = vld [vmem:[#allocation2 + $0x248] sm:$0xff]
    %v684 = vld [vmem:[#allocation2 + $0x250] sm:$0xff]
    %v685 = vld [vmem:[#allocation2 + $0x258] sm:$0xff]
    %v686 = vld [vmem:[#allocation2 + $0x260] sm:$0xff]
    %v687 = vld [vmem:[#allocation2 + $0x268] sm:$0xff]
    %v688 = vld [vmem:[#allocation2 + $0x270] sm:$0xff]
    %v689 = vld [vmem:[#allocation2 + $0x278] sm:$0xff]
    %v690 = vld [vmem:[#allocation2 + $0x280] sm:$0xff]
    %v691 = vld [vmem:[#allocation2 + $0x288] sm:$0xff]
    %v692 = vld [vmem:[#allocation2 + $0x290] sm:$0xff]
    %v693 = vld [vmem:[#allocation2 + $0x298] sm:$0xff]
    %v694 = vld [vmem:[#allocation2 + $0x2a0] sm:$0xff]
    %v695 = vld [vmem:[#allocation2 + $0x2a8] sm:$0xff]
    %v696 = vld [vmem:[#allocation2 + $0x2b0] sm:$0xff]
    %v697 = vld [vmem:[#allocation2 + $0x2b8] sm:$0xff]
    %v698 = vld [vmem:[#allocation2 + $0x2c0] sm:$0xff]
    %v699 = vld [vmem:[#allocation2 + $0x2c8] sm:$0xff]
    %v700 = vld [vmem:[#allocation2 + $0x2d0] sm:$0xff]
    %v701 = vld [vmem:[#allocation2 + $0x2d8] sm:$0xff]
    %v702 = vld [vmem:[#allocation2 + $0x2e0] sm:$0xff]
    %v703 = vld [vmem:[#allocation2 + $0x2e8] sm:$0xff]
    %v704 = vld [vmem:[#allocation2 + $0x2f0] sm:$0xff]
    %v705 = vld [vmem:[#allocation2 + $0x2f8] sm:$0xff]
    %v706 = vld [vmem:[#allocation2 + $0x300] sm:$0xff]
    %v707 = vld [vmem:[#allocation2 + $0x308] sm:$0xff]
    %v708 = vld [vmem:[#allocation2 + $0x310] sm:$0xff]
    %v709 = vld [vmem:[#allocation2 + $0x318] sm:$0xff]
    %v710 = vld [vmem:[#allocation2 + $0x320] sm:$0xff]
    %v711 = vld [vmem:[#allocation2 + $0x328] sm:$0xff]
    %v712 = vld [vmem:[#allocation2 + $0x330] sm:$0xff]
    %v713 = vld [vmem:[#allocation2 + $0x338] sm:$0xff]
    %v714 = vld [vmem:[#allocation2 + $0x340] sm:$0xff]
    %v715 = vld [vmem:[#allocation2 + $0x348] sm:$0xff]
    %v716 = vld [vmem:[#allocation2 + $0x350] sm:$0xff]
    %v717 = vld [vmem:[#allocation2 + $0x358] sm:$0xff]
    %v718 = vld [vmem:[#allocation2 + $0x360] sm:$0xff]
    %v719 = vld [vmem:[#allocation2 + $0x368] sm:$0xff]
    %v720 = vld [vmem:[#allocation2 + $0x370] sm:$0xff]
    %v721 = vld [vmem:[#allocation2 + $0x378] sm:$0xff]
    %v722 = vld [vmem:[#allocation2 + $0x380] sm:$0xff]
    %v723 = vld [vmem:[#allocation2 + $0x388] sm:$0xff]
    %v724 = vld [vmem:[#allocation2 + $0x390] sm:$0xff]
    %v725 = vld [vmem:[#allocation2 + $0x398] sm:$0xff]
    %v726 = vld [vmem:[#allocation2 + $0x3a0] sm:$0xff]
    %v727 = vld [vmem:[#allocation2 + $0x3a8] sm:$0xff]
    %v728 = vld [vmem:[#allocation2 + $0x3b0] sm:$0xff]
    %v729 = vld [vmem:[#allocation2 + $0x3b8] sm:$0xff]
    %v730 = vld [vmem:[#allocation2 + $0x3c0] sm:$0xff]
    %v731 = vld [vmem:[#allocation2 + $0x3c8] sm:$0xff]
    %v732 = vld [vmem:[#allocation2 + $0x3d0] sm:$0xff]
    %v733 = vld [vmem:[#allocation2 + $0x3d8] sm:$0xff]
    %v734 = vld [vmem:[#allocation2 + $0x3e0] sm:$0xff]
    %v735 = vld [vmem:[#allocation2 + $0x3e8] sm:$0xff]
    %v736 = vld [vmem:[#allocation2 + $0x3f0] sm:$0xff]
    %v737 = vld [vmem:[#allocation2 + $0x3f8] sm:$0xff]
    %v738 = vld [vmem:[%s4] sm:$0x1]
    %v740 = vperm.slane %v738, 0
    %742 = vmatpush.msra.mxu0 %v625
    %743 = vmatpush.msra.mxu0 %v624
    %744 = vmatpush.msra.mxu0 %v623
    %745 = vmatpush.msra.mxu0 %v622
    %746 = vmatpush.msra.mxu0 %v621
    %747 = vmatpush.msra.mxu0 %v620
    %748 = vmatpush.msra.mxu0 %v619
    %749 = vmatpush.msra.mxu0 %v618
    %750 = vmatpush.msra.mxu0 %v617
    %751 = vmatpush.msra.mxu0 %v616
    %752 = vmatpush.msra.mxu0 %v615
    %753 = vmatpush.msra.mxu0 %v614
    %754 = vmatpush.msra.mxu0 %v613
    %755 = vmatpush.msra.mxu0 %v612
    %756 = vmatpush.msra.mxu0 %v611
    %757 = vmatpush.msra.mxu0 %v610
    %758 = vmatmul.f32.gmra.mxu0 %v602
    %v759 = vpop.f32.mrf.mxu0
    %v760 = vadd.f32 %v740, %v759
    %761 = vdwg.mxu0
    %762 = vmatpush.msra.mxu0 %v641
    %763 = vmatpush.msra.mxu0 %v640
    %764 = vmatpush.msra.mxu0 %v639
    %765 = vmatpush.msra.mxu0 %v638
    %766 = vmatpush.msra.mxu0 %v637
    %767 = vmatpush.msra.mxu0 %v636
    %768 = vmatpush.msra.mxu0 %v635
    %769 = vmatpush.msra.mxu0 %v634
    %770 = vmatpush.msra.mxu0 %v633
    %771 = vmatpush.msra.mxu0 %v632
    %772 = vmatpush.msra.mxu0 %v631
    %773 = vmatpush.msra.mxu0 %v630
    %774 = vmatpush.msra.mxu0 %v629
    %775 = vmatpush.msra.mxu0 %v628
    %776 = vmatpush.msra.mxu0 %v627
    %777 = vmatpush.msra.mxu0 %v626
    %778 = vmatmul.f32.gmra.mxu0 %v603
    %v779 = vpop.f32.mrf.mxu0
    %v780 = vadd.f32 %v760, %v779
    %781 = vdwg.mxu0
    %782 = vmatpush.msra.mxu0 %v657
    %783 = vmatpush.msra.mxu0 %v656
    %784 = vmatpush.msra.mxu0 %v655
    %785 = vmatpush.msra.mxu0 %v654
    %786 = vmatpush.msra.mxu0 %v653
    %787 = vmatpush.msra.mxu0 %v652
    %788 = vmatpush.msra.mxu0 %v651
    %789 = vmatpush.msra.mxu0 %v650
    %790 = vmatpush.msra.mxu0 %v649
    %791 = vmatpush.msra.mxu0 %v648
    %792 = vmatpush.msra.mxu0 %v647
    %793 = vmatpush.msra.mxu0 %v646
    %794 = vmatpush.msra.mxu0 %v645
    %795 = vmatpush.msra.mxu0 %v644
    %796 = vmatpush.msra.mxu0 %v643
    %797 = vmatpush.msra.mxu0 %v642
    %798 = vmatmul.f32.gmra.mxu0 %v604
    %v799 = vpop.f32.mrf.mxu0
    %v800 = vadd.f32 %v780, %v799
    %801 = vdwg.mxu0
    %802 = vmatpush.msra.mxu0 %v673
    %803 = vmatpush.msra.mxu0 %v672
    %804 = vmatpush.msra.mxu0 %v671
    %805 = vmatpush.msra.mxu0 %v670
    %806 = vmatpush.msra.mxu0 %v669
    %807 = vmatpush.msra.mxu0 %v668
    %808 = vmatpush.msra.mxu0 %v667
    %809 = vmatpush.msra.mxu0 %v666
    %810 = vmatpush.msra.mxu0 %v665
    %811 = vmatpush.msra.mxu0 %v664
    %812 = vmatpush.msra.mxu0 %v663
    %813 = vmatpush.msra.mxu0 %v662
    %814 = vmatpush.msra.mxu0 %v661
    %815 = vmatpush.msra.mxu0 %v660
    %816 = vmatpush.msra.mxu0 %v659
    %817 = vmatpush.msra.mxu0 %v658
    %818 = vmatmul.f32.gmra.mxu0 %v605
    %v819 = vpop.f32.mrf.mxu0
    %v820 = vadd.f32 %v800, %v819
    %821 = vdwg.mxu0
    %822 = vmatpush.msra.mxu0 %v689
    %823 = vmatpush.msra.mxu0 %v688
    %824 = vmatpush.msra.mxu0 %v687
    %825 = vmatpush.msra.mxu0 %v686
    %826 = vmatpush.msra.mxu0 %v685
    %827 = vmatpush.msra.mxu0 %v684
    %828 = vmatpush.msra.mxu0 %v683
    %829 = vmatpush.msra.mxu0 %v682
    %830 = vmatpush.msra.mxu0 %v681
    %831 = vmatpush.msra.mxu0 %v680
    %832 = vmatpush.msra.mxu0 %v679
    %833 = vmatpush.msra.mxu0 %v678
    %834 = vmatpush.msra.mxu0 %v677
    %835 = vmatpush.msra.mxu0 %v676
    %836 = vmatpush.msra.mxu0 %v675
    %837 = vmatpush.msra.mxu0 %v674
    %838 = vmatmul.f32.gmra.mxu0 %v606
    %v839 = vpop.f32.mrf.mxu0
    %v840 = vadd.f32 %v820, %v839
    %841 = vdwg.mxu0
    %842 = vmatpush.msra.mxu0 %v705
    %843 = vmatpush.msra.mxu0 %v704
    %844 = vmatpush.msra.mxu0 %v703
    %845 = vmatpush.msra.mxu0 %v702
    %846 = vmatpush.msra.mxu0 %v701
    %847 = vmatpush.msra.mxu0 %v700
    %848 = vmatpush.msra.mxu0 %v699
    %849 = vmatpush.msra.mxu0 %v698
    %850 = vmatpush.msra.mxu0 %v697
    %851 = vmatpush.msra.mxu0 %v696
    %852 = vmatpush.msra.mxu0 %v695
    %853 = vmatpush.msra.mxu0 %v694
    %854 = vmatpush.msra.mxu0 %v693
    %855 = vmatpush.msra.mxu0 %v692
    %856 = vmatpush.msra.mxu0 %v691
    %857 = vmatpush.msra.mxu0 %v690
    %858 = vmatmul.f32.gmra.mxu0 %v607
    %v859 = vpop.f32.mrf.mxu0
    %v860 = vadd.f32 %v840, %v859
    %861 = vdwg.mxu0
    %862 = vmatpush.msra.mxu0 %v721
    %863 = vmatpush.msra.mxu0 %v720
    %864 = vmatpush.msra.mxu0 %v719
    %865 = vmatpush.msra.mxu0 %v718
    %866 = vmatpush.msra.mxu0 %v717
    %867 = vmatpush.msra.mxu0 %v716
    %868 = vmatpush.msra.mxu0 %v715
    %869 = vmatpush.msra.mxu0 %v714
    %870 = vmatpush.msra.mxu0 %v713
    %871 = vmatpush.msra.mxu0 %v712
    %872 = vmatpush.msra.mxu0 %v711
    %873 = vmatpush.msra.mxu0 %v710
    %874 = vmatpush.msra.mxu0 %v709
    %875 = vmatpush.msra.mxu0 %v708
    %876 = vmatpush.msra.mxu0 %v707
    %877 = vmatpush.msra.mxu0 %v706
    %878 = vmatmul.f32.gmra.mxu0 %v608
    %v879 = vpop.f32.mrf.mxu0
    %v880 = vadd.f32 %v860, %v879
    %881 = vdwg.mxu0
    %882 = vmatpush.msra.mxu0 %v737
    %883 = vmatpush.msra.mxu0 %v736
    %884 = vmatpush.msra.mxu0 %v735
    %885 = vmatpush.msra.mxu0 %v734
    %886 = vmatpush.msra.mxu0 %v733
    %887 = vmatpush.msra.mxu0 %v732
    %888 = vmatpush.msra.mxu0 %v731
    %889 = vmatpush.msra.mxu0 %v730
    %890 = vmatpush.msra.mxu0 %v729
    %891 = vmatpush.msra.mxu0 %v728
    %892 = vmatpush.msra.mxu0 %v727
    %893 = vmatpush.msra.mxu0 %v726
    %894 = vmatpush.msra.mxu0 %v725
    %895 = vmatpush.msra.mxu0 %v724
    %896 = vmatpush.msra.mxu0 %v723
    %897 = vmatpush.msra.mxu0 %v722
    %898 = vmatmul.f32.gmra.mxu0 %v609
    %v899 = vpop.f32.mrf.mxu0
    %v900 = vadd.f32 %v880, %v899
    %901 = vdwg.mxu0
    %902 = vst [vmem:[%s6] sm:$0xff] %v900
    // Predicated region
    $region34: #{iter_star_rgb_forward.2} parent=1 // pred_check
      _
    $region35: #{iter_star_rgb_forward.2} parent=1 // pred_check_branch
      %904 = sbr.rel (0) target = $region37
    $region36: #{iter_star_rgb_forward.2} parent=1 // pred_region
      _
    $region37: #{iter_star_rgb_forward.2} parent=1 // pred_fallthru
      _
    // Predicated region
    $region38: #{iter_star_rgb_forward.2} parent=1 // pred_check
      _
    $region39: #{iter_star_rgb_forward.2} parent=1 // pred_check_branch
      %906 = sbr.rel (0) target = $region41
    $region40: #{iter_star_rgb_forward.2} parent=1 // pred_region
      _
    $region41: #{iter_star_rgb_forward.2} parent=1 // pred_fallthru
      _
    %907 = vsyncpa [#allocation3], 1
    %908 = vsyncpa [#allocation4], 1

// kernel: iter_star_rgb_forward.3
$region0: #{iter_star_rgb_forward.3}
  #allocation0 [shape = 'u32[]', space=smem, size = 0x4, offset = 0x4, fixed_abs, tag = 'smem constant byte address 0x4 - core index']
  #allocation1 [shape = 'u32[72,128]{1,0:T(1,128)}', space=vmem, size = 0x9000, scoped, tag = 'internal scratch']
  #allocation2 [shape = 'f32[8,128]{1,0:T(8,128)}', space=vmem, size = 0x1000, scoped, tag = 'scratch operand']
  #allocation3 [shape = 'f32[8,32]{1,0:T(8,128)}', space=vmem, size = 0x1000, scoped, tag = 'scratch operand']
  %s0 = inlined_call_operand.vmem [shape: f32[8,128], index: 0, kind: input, shape index: {}]
  %s1 = inlined_call_operand.vmem [shape: f32[32,128], index: 1, kind: input, shape index: {}]
  %s2 = inlined_call_operand.vmem [shape: f32[32,128], index: 2, kind: input, shape index: {}]
  %s3 = inlined_call_operand.vmem [shape: f32[32,128], index: 3, kind: input, shape index: {}]
  %s4 = inlined_call_operand.vmem [shape: f32[1,128], index: 4, kind: input, shape index: {}]
  %s5 = inlined_call_operand.vmem [shape: f32[32,128], index: 5, kind: input, shape index: {}]
  %s6 = inlined_call_operand.vmem [shape: f32[1,128], index: 6, kind: input, shape index: {}]
  %s7 = inlined_call_operand.vmem [shape: f32[8,128], index: 7, kind: output, shape index: {}]
  %s8 = sld [smem:[#allocation0]]
  $region38: #{iter_star_rgb_forward.3} parent=0
    _
  %s10 = ssub.s32 1, %s8
  %s11 = scalar_select 0, %s10, %s8
  // Predicated region
  $region2: #{iter_star_rgb_forward.3} parent=0 // pred_check
    _
  $region3: #{iter_star_rgb_forward.3} parent=0 // pred_check_branch
    %13 = sbr.rel (0) target = $region5
  $region4: #{iter_star_rgb_forward.3} parent=0 // pred_region
    _
  $region5: #{iter_star_rgb_forward.3} parent=0 // pred_fallthru
    _
  // Predicated region
  $region6: #{iter_star_rgb_forward.3} parent=0 // pred_check
    _
  $region7: #{iter_star_rgb_forward.3} parent=0 // pred_check_branch
    %15 = sbr.rel (0) target = $region9
  $region8: #{iter_star_rgb_forward.3} parent=0 // pred_region
    _
  $region9: #{iter_star_rgb_forward.3} parent=0 // pred_fallthru
    _
  // Predicated region
  $region10: #{iter_star_rgb_forward.3} parent=0 // pred_check
    _
  $region11: #{iter_star_rgb_forward.3} parent=0 // pred_check_branch
    %17 = sbr.rel (0) target = $region13
  $region12: #{iter_star_rgb_forward.3} parent=0 // pred_region
    _
  $region13: #{iter_star_rgb_forward.3} parent=0 // pred_fallthru
    _
  // Predicated region
  $region14: #{iter_star_rgb_forward.3} parent=0 // pred_check
    _
  $region15: #{iter_star_rgb_forward.3} parent=0 // pred_check_branch
    %19 = sbr.rel (0) target = $region17
  $region16: #{iter_star_rgb_forward.3} parent=0 // pred_region
    _
  $region17: #{iter_star_rgb_forward.3} parent=0 // pred_fallthru
    _
  // Predicated region
  $region18: #{iter_star_rgb_forward.3} parent=0 // pred_check
    _
  $region19: #{iter_star_rgb_forward.3} parent=0 // pred_check_branch
    %21 = sbr.rel (0) target = $region21
  $region20: #{iter_star_rgb_forward.3} parent=0 // pred_region
    _
  $region21: #{iter_star_rgb_forward.3} parent=0 // pred_fallthru
    _
  // Predicated region
  $region22: #{iter_star_rgb_forward.3} parent=0 // pred_check
    _
  $region23: #{iter_star_rgb_forward.3} parent=0 // pred_check_branch
    %23 = sbr.rel (0) target = $region25
  $region24: #{iter_star_rgb_forward.3} parent=0 // pred_region
    _
  $region25: #{iter_star_rgb_forward.3} parent=0 // pred_fallthru
    _
  // Predicated region
  $region26: #{iter_star_rgb_forward.3} parent=0 // pred_check
    _
  $region27: #{iter_star_rgb_forward.3} parent=0 // pred_check_branch
    %25 = sbr.rel (0) target = $region29
  $region28: #{iter_star_rgb_forward.3} parent=0 // pred_region
    _
  $region29: #{iter_star_rgb_forward.3} parent=0 // pred_fallthru
    _
  %v26 = vlaneseq
  %v27 = vand.u32 %v26, 127
  %vm28 = vcmp.ge.s32.totalorder %v27, 64
  %vm29 = vcmp.lt.s32.totalorder %v27, 96
  %vm30 = vmand %vm28, %vm29
  %v31 = vld [vmem:[%s1] sm:$0xff]
  %v32 = vld [vmem:[%s1 + $0x8] sm:$0xff]
  %v33 = vld [vmem:[%s1 + $0x10] sm:$0xff]
  %v34 = vld [vmem:[%s1 + $0x18] sm:$0xff]
  %v35 = vld [vmem:[%s0] sm:$0x3]
  %vm36 = vcmask 261120
  %v38 = vsel %vm36, 0.0, 0
  %40 = vmatpush.msra.mxu0 0.0
  %41 = vmatpush.msra.mxu0 0.0
  %42 = vmatpush.msra.mxu0 0.0
  %43 = vmatpush.msra.mxu0 0.0
  %44 = vmatpush.msra.mxu0 0.0
  %45 = vmatpush.msra.mxu0 0.0
  %46 = vmatpush.msra.mxu0 0.0
  %47 = vmatpush.msra.mxu0 0.0
  %48 = vmatpush.msra.mxu0 0.0
  %49 = vmatpush.msra.mxu0 0.0
  %50 = vmatpush.msra.mxu0 0.0
  %51 = vmatpush.msra.mxu0 0.0
  %52 = vmatpush.msra.mxu0 %v34
  %53 = vmatpush.msra.mxu0 %v33
  %54 = vmatpush.msra.mxu0 %v32
  %55 = vmatpush.msra.mxu0 %v31
  %56 = vmatmul.f32.gmra.mxu0 %v38
  %v57 = vpop.f32.mrf.mxu0
  %v58 = vadd.f32 0.0, %v57
  %59 = vdwg.mxu0
  %v60 = vadd.f32 %v35, %v58
  %v61 = vtanh.pop %v60
  %v62 = vmul.f32 %v61, 0.5
  %v63 = vadd.f32 %v62, 0.5
  %v64 = vsel %vm30, %v61, %v63
  %v65 = vmul.f32 %v64, 0.0
  %67 = vrot.lane.b32.xlu0 %v64, 64
  %v68 = vpop.permute.xlu0 %67
  %v70 = vmul.f32 %v64, %v68
  %72 = vrot.lane.b32.xlu0 %v70, 32
  %v73 = vpop.permute.xlu0 %72
  %v75 = vadd.f32 %v65, %v73
  %v76 = vtanh.pop %v75
  %78 = vrot.lane.b32.xlu0 %v76, 64
  %v79 = vpop.permute.xlu0 %78
  %v81 = vmul.f32 %v64, %v79
  %83 = vrot.lane.b32.xlu0 %v81, 32
  %v84 = vpop.permute.xlu0 %83
  %vm86 = vcmask 254976
  %87 = vst.msk [vmem:[#allocation3] sm:$0x3] %vm86, %v84
  %v88 = vld [vmem:[%s0 + $0x2] sm:$0x3]
  %v89 = vsel %vm36, %v84, 0
  %91 = vmatpush.msra.mxu0 0.0
  %92 = vmatpush.msra.mxu0 0.0
  %93 = vmatpush.msra.mxu0 0.0
  %94 = vmatpush.msra.mxu0 0.0
  %95 = vmatpush.msra.mxu0 0.0
  %96 = vmatpush.msra.mxu0 0.0
  %97 = vmatpush.msra.mxu0 0.0
  %98 = vmatpush.msra.mxu0 0.0
  %99 = vmatpush.msra.mxu0 0.0
  %100 = vmatpush.msra.mxu0 0.0
  %101 = vmatpush.msra.mxu0 0.0
  %102 = vmatpush.msra.mxu0 0.0
  %103 = vmatpush.msra.mxu0 %v34
  %104 = vmatpush.msra.mxu0 %v33
  %105 = vmatpush.msra.mxu0 %v32
  %106 = vmatpush.msra.mxu0 %v31
  %107 = vmatmul.f32.gmra.mxu0 %v89
  %v108 = vpop.f32.mrf.mxu0
  %v109 = vadd.f32 0.0, %v108
  %110 = vdwg.mxu0
  %v111 = vadd.f32 %v88, %v109
  %v112 = vtanh.pop %v111
  %v113 = vmul.f32 %v112, 0.5
  %v114 = vadd.f32 %v113, 0.5
  %v115 = vsel %vm30, %v112, %v114
  %v116 = vmul.f32 %v115, %v75
  %118 = vrot.lane.b32.xlu0 %v115, 64
  %v119 = vpop.permute.xlu0 %118
  %v121 = vmul.f32 %v115, %v119
  %123 = vrot.lane.b32.xlu0 %v121, 32
  %v124 = vpop.permute.xlu0 %123
  %v126 = vadd.f32 %v116, %v124
  %v127 = vtanh.pop %v126
  %129 = vrot.lane.b32.xlu0 %v127, 64
  %v130 = vpop.permute.xlu0 %129
  %v132 = vmul.f32 %v115, %v130
  %134 = vrot.lane.b32.xlu0 %v132, 32
  %v135 = vpop.permute.xlu0 %134
  %137 = vst.msk [vmem:[#allocation3 + $0x2] sm:$0x3] %vm86, %v135
  %v138 = vld [vmem:[%s0 + $0x4] sm:$0x3]
  %v139 = vsel %vm36, %v135, 0
  %141 = vmatpush.msra.mxu0 0.0
  %142 = vmatpush.msra.mxu0 0.0
  %143 = vmatpush.msra.mxu0 0.0
  %144 = vmatpush.msra.mxu0 0.0
  %145 = vmatpush.msra.mxu0 0.0
  %146 = vmatpush.msra.mxu0 0.0
  %147 = vmatpush.msra.mxu0 0.0
  %148 = vmatpush.msra.mxu0 0.0
  %149 = vmatpush.msra.mxu0 0.0
  %150 = vmatpush.msra.mxu0 0.0
  %151 = vmatpush.msra.mxu0 0.0
  %152 = vmatpush.msra.mxu0 0.0
  %153 = vmatpush.msra.mxu0 %v34
  %154 = vmatpush.msra.mxu0 %v33
  %155 = vmatpush.msra.mxu0 %v32
  %156 = vmatpush.msra.mxu0 %v31
  %157 = vmatmul.f32.gmra.mxu0 %v139
  %v158 = vpop.f32.mrf.mxu0
  %v159 = vadd.f32 0.0, %v158
  %160 = vdwg.mxu0
  %v161 = vadd.f32 %v138, %v159
  %v162 = vtanh.pop %v161
  %v163 = vmul.f32 %v162, 0.5
  %v164 = vadd.f32 %v163, 0.5
  %v165 = vsel %vm30, %v162, %v164
  %v166 = vmul.f32 %v165, %v126
  %168 = vrot.lane.b32.xlu0 %v165, 64
  %v169 = vpop.permute.xlu0 %168
  %v171 = vmul.f32 %v165, %v169
  %173 = vrot.lane.b32.xlu0 %v171, 32
  %v174 = vpop.permute.xlu0 %173
  %v176 = vadd.f32 %v166, %v174
  %v177 = vtanh.pop %v176
  %179 = vrot.lane.b32.xlu0 %v177, 64
  %v180 = vpop.permute.xlu0 %179
  %v182 = vmul.f32 %v165, %v180
  %184 = vrot.lane.b32.xlu0 %v182, 32
  %v185 = vpop.permute.xlu0 %184
  %187 = vst.msk [vmem:[#allocation3 + $0x4] sm:$0x3] %vm86, %v185
  %v188 = vld [vmem:[%s0 + $0x6] sm:$0x3]
  %v189 = vsel %vm36, %v185, 0
  %191 = vmatpush.msra.mxu0 0.0
  %192 = vmatpush.msra.mxu0 0.0
  %193 = vmatpush.msra.mxu0 0.0
  %194 = vmatpush.msra.mxu0 0.0
  %195 = vmatpush.msra.mxu0 0.0
  %196 = vmatpush.msra.mxu0 0.0
  %197 = vmatpush.msra.mxu0 0.0
  %198 = vmatpush.msra.mxu0 0.0
  %199 = vmatpush.msra.mxu0 0.0
  %200 = vmatpush.msra.mxu0 0.0
  %201 = vmatpush.msra.mxu0 0.0
  %202 = vmatpush.msra.mxu0 0.0
  %203 = vmatpush.msra.mxu0 %v34
  %204 = vmatpush.msra.mxu0 %v33
  %205 = vmatpush.msra.mxu0 %v32
  %206 = vmatpush.msra.mxu0 %v31
  %207 = vmatmul.f32.gmra.mxu0 %v189
  %v208 = vpop.f32.mrf.mxu0
  %v209 = vadd.f32 0.0, %v208
  %210 = vdwg.mxu0
  %v211 = vadd.f32 %v188, %v209
  %v212 = vtanh.pop %v211
  %v213 = vmul.f32 %v212, 0.5
  %v214 = vadd.f32 %v213, 0.5
  %v215 = vsel %vm30, %v212, %v214
  %v216 = vmul.f32 %v215, %v176
  %218 = vrot.lane.b32.xlu0 %v215, 64
  %v219 = vpop.permute.xlu0 %218
  %v221 = vmul.f32 %v215, %v219
  %223 = vrot.lane.b32.xlu0 %v221, 32
  %v224 = vpop.permute.xlu0 %223
  %v226 = vadd.f32 %v216, %v224
  %v227 = vtanh.pop %v226
  %229 = vrot.lane.b32.xlu0 %v227, 64
  %v230 = vpop.permute.xlu0 %229
  %v232 = vmul.f32 %v215, %v230
  %234 = vrot.lane.b32.xlu0 %v232, 32
  %v235 = vpop.permute.xlu0 %234
  %237 = vst.msk [vmem:[#allocation3 + $0x6] sm:$0x3] %vm86, %v235
  %v238 = vld [vmem:[#allocation3] sm:$0xff]
  %v239 = vld [vmem:[%s2] sm:$0xff]
  %v240 = vld [vmem:[%s2 + $0x8] sm:$0xff]
  %v241 = vld [vmem:[%s2 + $0x10] sm:$0xff]
  %v242 = vld [vmem:[%s2 + $0x18] sm:$0xff]
  %v243 = vld [vmem:[%s4] sm:$0x1]
  %v245 = vperm.slane %v243, 0
  %v248 = vsel %vm36, %v238, 0
  %250 = vmatpush.msra.mxu0 0.0
  %251 = vmatpush.msra.mxu0 0.0
  %252 = vmatpush.msra.mxu0 0.0
  %253 = vmatpush.msra.mxu0 0.0
  %254 = vmatpush.msra.mxu0 0.0
  %255 = vmatpush.msra.mxu0 0.0
  %256 = vmatpush.msra.mxu0 0.0
  %257 = vmatpush.msra.mxu0 0.0
  %258 = vmatpush.msra.mxu0 0.0
  %259 = vmatpush.msra.mxu0 0.0
  %260 = vmatpush.msra.mxu0 0.0
  %261 = vmatpush.msra.mxu0 0.0
  %262 = vmatpush.msra.mxu0 %v242
  %263 = vmatpush.msra.mxu0 %v241
  %264 = vmatpush.msra.mxu0 %v240
  %265 = vmatpush.msra.mxu0 %v239
  %266 = vmatmul.f32.gmra.mxu0 %v248
  %v267 = vpop.f32.mrf.mxu0
  %v268 = vadd.f32 %v245, %v267
  %269 = vdwg.mxu0
  %270 = vst [vmem:[#allocation2] sm:$0xff] %v268
  %v271 = vld [vmem:[%s3] sm:$0xff]
  %v272 = vld [vmem:[%s3 + $0x8] sm:$0xff]
  %v273 = vld [vmem:[%s3 + $0x10] sm:$0xff]
  %v274 = vld [vmem:[%s3 + $0x18] sm:$0xff]
  %v275 = vld [vmem:[#allocation2] sm:$0x3]
  %276 = vmatpush.msra.mxu0 0.0
  %277 = vmatpush.msra.mxu0 0.0
  %278 = vmatpush.msra.mxu0 0.0
  %279 = vmatpush.msra.mxu0 0.0
  %280 = vmatpush.msra.mxu0 0.0
  %281 = vmatpush.msra.mxu0 0.0
  %282 = vmatpush.msra.mxu0 0.0
  %283 = vmatpush.msra.mxu0 0.0
  %284 = vmatpush.msra.mxu0 0.0
  %285 = vmatpush.msra.mxu0 0.0
  %286 = vmatpush.msra.mxu0 0.0
  %287 = vmatpush.msra.mxu0 0.0
  %288 = vmatpush.msra.mxu0 %v274
  %289 = vmatpush.msra.mxu0 %v273
  %290 = vmatpush.msra.mxu0 %v272
  %291 = vmatpush.msra.mxu0 %v271
  %292 = vmatmul.f32.gmra.mxu0 %v38
  %v293 = vpop.f32.mrf.mxu0
  %v294 = vadd.f32 0.0, %v293
  %295 = vdwg.mxu0
  %v296 = vadd.f32 %v275, %v294
  %v297 = vtanh.pop %v296
  %v298 = vmul.f32 %v297, 0.5
  %v299 = vadd.f32 %v298, 0.5
  %v300 = vsel %vm30, %v297, %v299
  %v301 = vmul.f32 %v300, 0.0
  %303 = vrot.lane.b32.xlu0 %v300, 64
  %v304 = vpop.permute.xlu0 %303
  %v306 = vmul.f32 %v300, %v304
  %308 = vrot.lane.b32.xlu0 %v306, 32
  %v309 = vpop.permute.xlu0 %308
  %v311 = vadd.f32 %v301, %v309
  %v312 = vtanh.pop %v311
  %314 = vrot.lane.b32.xlu0 %v312, 64
  %v315 = vpop.permute.xlu0 %314
  %v317 = vmul.f32 %v300, %v315
  %319 = vrot.lane.b32.xlu0 %v317, 32
  %v320 = vpop.permute.xlu0 %319
  %322 = vst.msk [vmem:[#allocation3] sm:$0x3] %vm86, %v320
  %v323 = vld [vmem:[#allocation2 + $0x2] sm:$0x3]
  %v324 = vsel %vm36, %v320, 0
  %326 = vmatpush.msra.mxu0 0.0
  %327 = vmatpush.msra.mxu0 0.0
  %328 = vmatpush.msra.mxu0 0.0
  %329 = vmatpush.msra.mxu0 0.0
  %330 = vmatpush.msra.mxu0 0.0
  %331 = vmatpush.msra.mxu0 0.0
  %332 = vmatpush.msra.mxu0 0.0
  %333 = vmatpush.msra.mxu0 0.0
  %334 = vmatpush.msra.mxu0 0.0
  %335 = vmatpush.msra.mxu0 0.0
  %336 = vmatpush.msra.mxu0 0.0
  %337 = vmatpush.msra.mxu0 0.0
  %338 = vmatpush.msra.mxu0 %v274
  %339 = vmatpush.msra.mxu0 %v273
  %340 = vmatpush.msra.mxu0 %v272
  %341 = vmatpush.msra.mxu0 %v271
  %342 = vmatmul.f32.gmra.mxu0 %v324
  %v343 = vpop.f32.mrf.mxu0
  %v344 = vadd.f32 0.0, %v343
  %345 = vdwg.mxu0
  %v346 = vadd.f32 %v323, %v344
  %v347 = vtanh.pop %v346
  %v348 = vmul.f32 %v347, 0.5
  %v349 = vadd.f32 %v348, 0.5
  %v350 = vsel %vm30, %v347, %v349
  %v351 = vmul.f32 %v350, %v311
  %353 = vrot.lane.b32.xlu0 %v350, 64
  %v354 = vpop.permute.xlu0 %353
  %v356 = vmul.f32 %v350, %v354
  %358 = vrot.lane.b32.xlu0 %v356, 32
  %v359 = vpop.permute.xlu0 %358
  %v361 = vadd.f32 %v351, %v359
  %v362 = vtanh.pop %v361
  %364 = vrot.lane.b32.xlu0 %v362, 64
  %v365 = vpop.permute.xlu0 %364
  %v367 = vmul.f32 %v350, %v365
  %369 = vrot.lane.b32.xlu0 %v367, 32
  %v370 = vpop.permute.xlu0 %369
  %372 = vst.msk [vmem:[#allocation3 + $0x2] sm:$0x3] %vm86, %v370
  %v373 = vld [vmem:[#allocation2 + $0x4] sm:$0x3]
  %v374 = vsel %vm36, %v370, 0
  %376 = vmatpush.msra.mxu0 0.0
  %377 = vmatpush.msra.mxu0 0.0
  %378 = vmatpush.msra.mxu0 0.0
  %379 = vmatpush.msra.mxu0 0.0
  %380 = vmatpush.msra.mxu0 0.0
  %381 = vmatpush.msra.mxu0 0.0
  %382 = vmatpush.msra.mxu0 0.0
  %383 = vmatpush.msra.mxu0 0.0
  %384 = vmatpush.msra.mxu0 0.0
  %385 = vmatpush.msra.mxu0 0.0
  %386 = vmatpush.msra.mxu0 0.0
  %387 = vmatpush.msra.mxu0 0.0
  %388 = vmatpush.msra.mxu0 %v274
  %389 = vmatpush.msra.mxu0 %v273
  %390 = vmatpush.msra.mxu0 %v272
  %391 = vmatpush.msra.mxu0 %v271
  %392 = vmatmul.f32.gmra.mxu0 %v374
  %v393 = vpop.f32.mrf.mxu0
  %v394 = vadd.f32 0.0, %v393
  %395 = vdwg.mxu0
  %v396 = vadd.f32 %v373, %v394
  %v397 = vtanh.pop %v396
  %v398 = vmul.f32 %v397, 0.5
  %v399 = vadd.f32 %v398, 0.5
  %v400 = vsel %vm30, %v397, %v399
  %v401 = vmul.f32 %v400, %v361
  %403 = vrot.lane.b32.xlu0 %v400, 64
  %v404 = vpop.permute.xlu0 %403
  %v406 = vmul.f32 %v400, %v404
  %408 = vrot.lane.b32.xlu0 %v406, 32
  %v409 = vpop.permute.xlu0 %408
  %v411 = vadd.f32 %v401, %v409
  %v412 = vtanh.pop %v411
  %414 = vrot.lane.b32.xlu0 %v412, 64
  %v415 = vpop.permute.xlu0 %414
  %v417 = vmul.f32 %v400, %v415
  %419 = vrot.lane.b32.xlu0 %v417, 32
  %v420 = vpop.permute.xlu0 %419
  %422 = vst.msk [vmem:[#allocation3 + $0x4] sm:$0x3] %vm86, %v420
  %v423 = vld [vmem:[#allocation2 + $0x6] sm:$0x3]
  %v424 = vsel %vm36, %v420, 0
  %426 = vmatpush.msra.mxu0 0.0
  %427 = vmatpush.msra.mxu0 0.0
  %428 = vmatpush.msra.mxu0 0.0
  %429 = vmatpush.msra.mxu0 0.0
  %430 = vmatpush.msra.mxu0 0.0
  %431 = vmatpush.msra.mxu0 0.0
  %432 = vmatpush.msra.mxu0 0.0
  %433 = vmatpush.msra.mxu0 0.0
  %434 = vmatpush.msra.mxu0 0.0
  %435 = vmatpush.msra.mxu0 0.0
  %436 = vmatpush.msra.mxu0 0.0
  %437 = vmatpush.msra.mxu0 0.0
  %438 = vmatpush.msra.mxu0 %v274
  %439 = vmatpush.msra.mxu0 %v273
  %440 = vmatpush.msra.mxu0 %v272
  %441 = vmatpush.msra.mxu0 %v271
  %442 = vmatmul.f32.gmra.mxu0 %v424
  %v443 = vpop.f32.mrf.mxu0
  %v444 = vadd.f32 0.0, %v443
  %445 = vdwg.mxu0
  %v446 = vadd.f32 %v423, %v444
  %v447 = vtanh.pop %v446
  %v448 = vmul.f32 %v447, 0.5
  %v449 = vadd.f32 %v448, 0.5
  %v450 = vsel %vm30, %v447, %v449
  %v451 = vmul.f32 %v450, %v411
  %453 = vrot.lane.b32.xlu0 %v450, 64
  %v454 = vpop.permute.xlu0 %453
  %v456 = vmul.f32 %v450, %v454
  %458 = vrot.lane.b32.xlu0 %v456, 32
  %v459 = vpop.permute.xlu0 %458
  %v461 = vadd.f32 %v451, %v459
  %v462 = vtanh.pop %v461
  %464 = vrot.lane.b32.xlu0 %v462, 64
  %v465 = vpop.permute.xlu0 %464
  %v467 = vmul.f32 %v450, %v465
  %469 = vrot.lane.b32.xlu0 %v467, 32
  %v470 = vpop.permute.xlu0 %469
  %472 = vst.msk [vmem:[#allocation3 + $0x6] sm:$0x3] %vm86, %v470
  %v473 = vld [vmem:[#allocation3] sm:$0xff]
  %v474 = vld [vmem:[%s5] sm:$0xff]
  %v475 = vld [vmem:[%s5 + $0x8] sm:$0xff]
  %v476 = vld [vmem:[%s5 + $0x10] sm:$0xff]
  %v477 = vld [vmem:[%s5 + $0x18] sm:$0xff]
  %v478 = vld [vmem:[%s6] sm:$0x1]
  %v480 = vperm.slane %v478, 0
  %v483 = vsel %vm36, %v473, 0
  %485 = vmatpush.msra.mxu0 0.0
  %486 = vmatpush.msra.mxu0 0.0
  %487 = vmatpush.msra.mxu0 0.0
  %488 = vmatpush.msra.mxu0 0.0
  %489 = vmatpush.msra.mxu0 0.0
  %490 = vmatpush.msra.mxu0 0.0
  %491 = vmatpush.msra.mxu0 0.0
  %492 = vmatpush.msra.mxu0 0.0
  %493 = vmatpush.msra.mxu0 0.0
  %494 = vmatpush.msra.mxu0 0.0
  %495 = vmatpush.msra.mxu0 0.0
  %496 = vmatpush.msra.mxu0 0.0
  %497 = vmatpush.msra.mxu0 %v477
  %498 = vmatpush.msra.mxu0 %v476
  %499 = vmatpush.msra.mxu0 %v475
  %500 = vmatpush.msra.mxu0 %v474
  %501 = vmatmul.f32.gmra.mxu0 %v483
  %v502 = vpop.f32.mrf.mxu0
  %v503 = vadd.f32 %v480, %v502
  %504 = vdwg.mxu0
  %505 = vst [vmem:[%s7] sm:$0xff] %v503
  // Predicated region
  $region30: #{iter_star_rgb_forward.3} parent=0 // pred_check
    _
  $region31: #{iter_star_rgb_forward.3} parent=0 // pred_check_branch
    %507 = sbr.rel (0) target = $region33
  $region32: #{iter_star_rgb_forward.3} parent=0 // pred_region
    _
  $region33: #{iter_star_rgb_forward.3} parent=0 // pred_fallthru
    _
  // Predicated region
  $region34: #{iter_star_rgb_forward.3} parent=0 // pred_check
    _
  $region35: #{iter_star_rgb_forward.3} parent=0 // pred_check_branch
    %509 = sbr.rel (0) target = $region37
  $region36: #{iter_star_rgb_forward.3} parent=0 // pred_region
    _
  $region37: #{iter_star_rgb_forward.3} parent=0 // pred_fallthru
    _

</llo_original>
